<compile_context>
chip_gen: v7x
topology: tpu7x:2x2x1
jax: 0.10.0
libtpu: 0.0.40
codegen_flags: <defaults>
</compile_context>

<pallas_src>
import jax
import jax.numpy as jnp
from jax.experimental import pallas as pl
from jax.experimental.pallas import tpu as pltpu


_GROUP = 128                 # original rows packed per lane-dense group
_IN_LANES = _GROUP * 12      # 1536 lanes per input group-row
_OUT_LANES = _GROUP * 3      # 384 lanes per output group-row


def fusion_kernel(x_ref, w_ref, o_ref):
    """x_ref: (TG, 1536) VMEM, w_ref: (1536, 384) VMEM (resident), o_ref: (TG, 384)."""
    o_ref[...] = jnp.dot(
        x_ref[...], w_ref[...], preferred_element_type=jnp.float32
    ).astype(o_ref.dtype)


def _dense_weight(w_stack):
    """(3, 4) per-channel weights -> dense (12, 3) W with W[3p+c, c] = w[c, p]."""
    return jnp.concatenate([jnp.diag(w_stack[:, p]) for p in range(4)], axis=0)


def _block_diag_weight(w_stack, dtype):
    """(3, 4) -> (1536, 384) block-diagonal weight for the lane-dense layout."""
    w12 = _dense_weight(w_stack).astype(dtype)           # (12, 3)
    return jnp.kron(jnp.eye(_GROUP, dtype=dtype), w12)   # (1536, 384)


def _reference(xf, w_stack):
    """Plain-JAX forward for tiny inputs (and numerical reference)."""
    return jnp.einsum(
        "npc,cp->nc", xf.reshape(-1, 4, 3), w_stack.astype(xf.dtype)
    ).astype(xf.dtype)


def fusion_net(x, w_stack, *, max_tile_g=1024, use_pallas=None):
    """Reproduces FusionNet.forward.

    x       : any shape whose element count is a multiple of 12
    w_stack : (3, 4) -- rows are h_net / s_net / i_net fc weights
    returns : (N, 3) with N = x.size // 12, columns [h_out, s_out, i_out]
    """
    xf = x.reshape(-1, 12)                     # == torch x.view(-1, 12)
    n = xf.shape[0]

    if use_pallas is None:
        use_pallas = n >= 100_000              # small-N fallback: launch overhead wins
    if not use_pallas:
        return _reference(xf, w_stack)

    itemsize = jnp.dtype(xf.dtype).itemsize
    sub = {4: 8, 2: 16, 1: 32}.get(itemsize, 8)   # sublane multiple per dtype width

    n_groups = pl.cdiv(n, _GROUP)
    if n_groups < 2 * sub:
        tile_g = n_groups                       # single (full-dim) block, tiny problem
    else:
        # >= 2 grid steps (v7x megacore), capped so double-buffered VMEM stays
        # well under the 32 MiB scoped default on every generation.
        half = pl.cdiv(n_groups, 2)
        tile_g = min(max_tile_g, ((half + sub - 1) // sub) * sub)

    n_groups_pad = pl.cdiv(n_groups, tile_g) * tile_g
    rows_pad = n_groups_pad * _GROUP
    if rows_pad != n:
        xf = jnp.pad(xf, ((0, rows_pad - n), (0, 0)))   # zero tail, sliced off below

    x_groups = xf.reshape(n_groups_pad, _IN_LANES)      # free reshape of contiguous data
    w_bd = _block_diag_weight(w_stack, xf.dtype)        # (1536, 384), ~2.25 MiB f32

    out = pl.pallas_call(
        fusion_kernel,
        out_shape=jax.ShapeDtypeStruct((n_groups_pad, _OUT_LANES), xf.dtype),
        grid=(n_groups_pad // tile_g,),
        in_specs=[
            # lane-dense row tile of the repacked input
            pl.BlockSpec((tile_g, _IN_LANES), lambda i: (i, 0)),
            # whole block-diagonal weight, resident in VMEM across all steps
            pl.BlockSpec((_IN_LANES, _OUT_LANES), lambda i: (0, 0)),
        ],
        out_specs=pl.BlockSpec((tile_g, _OUT_LANES), lambda i: (i, 0)),
        compiler_params=pltpu.CompilerParams(
            dimension_semantics=("parallel",),          # megacore sharding on v7x
            vmem_limit_bytes=32 * 1024 * 1024,
        ),
        cost_estimate=pl.CostEstimate(
            flops=2 * n_groups_pad * _IN_LANES * _OUT_LANES,
            transcendentals=0,
            bytes_accessed=(
                n_groups_pad * (_IN_LANES + _OUT_LANES) * itemsize
                + _IN_LANES * _OUT_LANES * itemsize
            ),
        ),
    )(x_groups, w_bd)

    return out.reshape(rows_pad, 3)[:n]


if __name__ == "__main__":
    key = jax.random.PRNGKey(0)
    kx, kh, ks, ki, kx2 = jax.random.split(key, 5)

    # deterministic per-channel fc weights (h_net, s_net, i_net), shape (1, 4)
    w_h = 0.1 * jax.random.normal(kh, (1, 4), dtype=jnp.float32)
    w_s = 0.1 * jax.random.normal(ks, (1, 4), dtype=jnp.float32)
    w_i = 0.1 * jax.random.normal(ki, (1, 4), dtype=jnp.float32)
    w_stack = jnp.concatenate([w_h, w_s, w_i], axis=0)            # (3, 4)

    # small input: (2, 4, 12) -> view(-1, 12) gives 8 rows of 12 features
    x = jax.random.normal(kx, (2, 4, 12), dtype=jnp.float32)
    out = jax.block_until_ready(fusion_net(x, w_stack, use_pallas=True))

    xf = x.reshape(-1, 12)
    ref = jnp.concatenate(
        [xf[:, 0::3] @ w_h.T, xf[:, 1::3] @ w_s.T, xf[:, 2::3] @ w_i.T], axis=1
    )
    assert out.shape == (8, 3)
    assert jnp.allclose(out, ref, atol=1e-5, rtol=1e-5)

    # larger check exercising the multi-step tiled path (32 groups -> 2 grid steps)
    x2 = jax.random.normal(kx2, (4096, 12), dtype=jnp.float32)
    out2 = jax.block_until_ready(fusion_net(x2, w_stack, use_pallas=True))
    ref2 = jnp.concatenate(
        [x2[:, 0::3] @ w_h.T, x2[:, 1::3] @ w_s.T, x2[:, 2::3] @ w_i.T], axis=1
    )
    assert out2.shape == (4096, 3)
    assert jnp.allclose(out2, ref2, atol=1e-5, rtol=1e-5)

    print("KERNEL_OK")
</pallas_src>

<mosaic_0001>
module attributes {stable_mosaic.version = 11 : i64} {
  func.func @fusion_kernel(%arg0: i32, %arg1: memref<1x1536xf32, #tpu.memory_space<vmem>>, %arg2: memref<1536x384xf32, #tpu.memory_space<vmem>>, %arg3: memref<1x384xf32, #tpu.memory_space<vmem>>) attributes {dimension_semantics = [#tpu.dimension_semantics<parallel>], iteration_bounds = array<i64: 1>, scalar_prefetch = 0 : i64, scratch_operands = 0 : i64, tpu.core_type = #tpu.core_type<tc>, window_params = [{transform_indices = @transform_0, window_bounds = array<i64: 1, 1536>}, {pipeline_mode = #tpu.pipeline_mode<synchronous>, transform_indices = @transform_1, window_bounds = array<i64: 1536, 384>}, {transform_indices = @transform_2, window_bounds = array<i64: 1, 384>}]} {
    %c0 = arith.constant 0 : index
    %c0_0 = arith.constant 0 : index
    %0 = vector.load %arg1[%c0, %c0_0] : memref<1x1536xf32, #tpu.memory_space<vmem>>, vector<1x1536xf32>
    %c0_1 = arith.constant 0 : index
    %c0_2 = arith.constant 0 : index
    %1 = vector.load %arg2[%c0_1, %c0_2] : memref<1536x384xf32, #tpu.memory_space<vmem>>, vector<1536x384xf32>
    %cst = arith.constant dense<0.000000e+00> : vector<1x384xf32>
    %2 = tpu.matmul %0, %1, %cst {dimension_numbers = #tpu.dot_dimension_numbers<[1], [0], [0], [1], [0, 0, 1, 1], [], []>} : vector<1x1536xf32>, vector<1536x384xf32>, vector<1x384xf32> -> vector<1x384xf32>
    %c0_3 = arith.constant 0 : index
    %c0_4 = arith.constant 0 : index
    %3 = vector.load %arg3[%c0_3, %c0_4] : memref<1x384xf32, #tpu.memory_space<vmem>>, vector<1x384xf32>
    tpu.vector_store %arg3[%c0_3, %c0_4], %2 {strides = array<i32>} : memref<1x384xf32, #tpu.memory_space<vmem>>, vector<1x384xf32>,
    return
  }
  func.func @transform_0(%arg0: i32) -> (i32, i32) {
    %c0_i32 = arith.constant 0 : i32
    %c0_i32_0 = arith.constant 0 : i32
    return %arg0, %c0_i32 : i32, i32
  }
  func.func @transform_1(%arg0: i32) -> (i32, i32) {
    %c0_i32 = arith.constant 0 : i32
    %c0_i32_0 = arith.constant 0 : i32
    %c0_i32_1 = arith.constant 0 : i32
    return %c0_i32, %c0_i32_0 : i32, i32
  }
  func.func @transform_2(%arg0: i32) -> (i32, i32) {
    %c0_i32 = arith.constant 0 : i32
    %c0_i32_0 = arith.constant 0 : i32
    return %arg0, %c0_i32 : i32, i32
  }
}

</mosaic_0001>

<llo_original>
// kernel: tpu_custom_call.1
$region0: #{tpu_custom_call.1}
  #allocation0 [shape = 'u32[]', space=smem, size = 0x4, offset = 0x4, fixed_abs, tag = 'smem constant byte address 0x4 - core index']
  #allocation1 [shape = 'u32[144,128]{1,0:T(1,128)}', space=vmem, size = 0x12000, scoped, tag = 'internal scratch']
  %s0 = inlined_call_operand.hbm [shape: f32[1,1536], index: 0, kind: input, shape index: {}]
  %s1 = inlined_call_operand.hbm [shape: f32[1536,384], index: 1, kind: input, shape index: {}]
  %s2 = inlined_call_operand.hbm [shape: f32[1,384], index: 2, kind: output, shape index: {}]
  %s3 = sld [smem:[#allocation0]]
  $region26: #{tpu_custom_call.1} parent=0
    _
  %s5 = ssub.s32 1, %s3
  %s6 = scalar_select 0, %s5, %s3
  $region1: #{tpu_custom_call.1} parent=0
    #allocation2 [shape = 'u8[6144]{0}', space=vmem, size = 0x1800, scoped, tag = 'input window, operand 0, single buffered']
    #allocation3 [shape = 's32[1]{0}', space=sflag, size = 0x4, scoped, tag = 'scoped memory for tpu_custom_call.1']
    #allocation4 [shape = 's32[1]{0}', space=sflag, size = 0x4, scoped, tag = 'scoped memory for tpu_custom_call.1']
    #allocation5 [shape = 'u8[2359296]{0}', space=vmem, size = 0x240000, scoped, tag = 'input window, operand 1, single buffered']
    #allocation6 [shape = 's32[1]{0}', space=sflag, size = 0x4, scoped, tag = 'scoped memory for tpu_custom_call.1']
    #allocation7 [shape = 'u8[1536]{0}', space=vmem, size = 0x800, scoped, tag = 'output window, operand 0, single buffered']
    %7 = vsyncpa [#allocation3], 0
    %8 = vsyncpa [#allocation6], 0
    %9 = vsyncpa [#allocation4], 0
    // Predicated region
    $region2: #{tpu_custom_call.1} parent=1 // pred_check
      _
    $region3: #{tpu_custom_call.1} parent=1 // pred_check_branch
      %11 = sbr.rel (0) target = $region5
    $region4: #{tpu_custom_call.1} parent=1 // pred_region
      %s13 = ssub.s32 192, 192
      %14 = vsyncadd [#allocation3], %s13
      %s16 = sshll.u32 [#allocation2], 4
      %s17 = int_to_ptr.vmem [resolvable:$true] %s16
      %19 = dma.hbm_to_vmem [thread:$0]  %s0, 192, %s17, [#allocation3]
    $region5: #{tpu_custom_call.1} parent=1 // pred_fallthru
      _
    // Predicated region
    $region6: #{tpu_custom_call.1} parent=1 // pred_check
      _
    $region7: #{tpu_custom_call.1} parent=1 // pred_check_branch
      %21 = sbr.rel (0) target = $region9
    $region8: #{tpu_custom_call.1} parent=1 // pred_region
      %s23 = ssub.s32 73728, 73728
      %24 = vsyncadd [#allocation6], %s23
      %s25 = sshll.u32 [#allocation5], 4
      %s26 = int_to_ptr.vmem [resolvable:$true] %s25
      %31 = dma.hbm_to_vmem [thread:$0]  %s1, 73728, %s26, [#allocation6], 384, 384, 24
    $region9: #{tpu_custom_call.1} parent=1 // pred_fallthru
      _
    // Predicated region
    $region10: #{tpu_custom_call.1} parent=1 // pred_check
      _
    $region11: #{tpu_custom_call.1} parent=1 // pred_check_branch
      %33 = sbr.rel (0) target = $region13
    $region12: #{tpu_custom_call.1} parent=1 // pred_region
      %34 = dma.done [#allocation3], 192
    $region13: #{tpu_custom_call.1} parent=1 // pred_fallthru
      _
    // Predicated region
    $region14: #{tpu_custom_call.1} parent=1 // pred_check
      _
    $region15: #{tpu_custom_call.1} parent=1 // pred_check_branch
      %36 = sbr.rel (0) target = $region17
    $region16: #{tpu_custom_call.1} parent=1 // pred_region
      %37 = dma.done [#allocation6], 73728
    $region17: #{tpu_custom_call.1} parent=1 // pred_fallthru
      _
    %v38 = vld [vmem:[#allocation2] sm:$0xff]
    %v39 = vld [vmem:[#allocation2 + $0x8] sm:$0xf]
    %v40 = vld [vmem:[#allocation5] sm:$0xff]
    %v41 = vld [vmem:[#allocation5 + $0x8] sm:$0xff]
    %v42 = vld [vmem:[#allocation5 + $0x10] sm:$0xff]
    %v43 = vld [vmem:[#allocation5 + $0x18] sm:$0xff]
    %v44 = vld [vmem:[#allocation5 + $0x20] sm:$0xff]
    %v45 = vld [vmem:[#allocation5 + $0x28] sm:$0xff]
    %v46 = vld [vmem:[#allocation5 + $0x30] sm:$0xff]
    %v47 = vld [vmem:[#allocation5 + $0x38] sm:$0xff]
    %v48 = vld [vmem:[#allocation5 + $0x40] sm:$0xff]
    %v49 = vld [vmem:[#allocation5 + $0x48] sm:$0xff]
    %v50 = vld [vmem:[#allocation5 + $0x50] sm:$0xff]
    %v51 = vld [vmem:[#allocation5 + $0x58] sm:$0xff]
    %v52 = vld [vmem:[#allocation5 + $0x60] sm:$0xff]
    %v53 = vld [vmem:[#allocation5 + $0x68] sm:$0xff]
    %v54 = vld [vmem:[#allocation5 + $0x70] sm:$0xff]
    %v55 = vld [vmem:[#allocation5 + $0x78] sm:$0xff]
    %v56 = vld [vmem:[#allocation5 + $0x80] sm:$0xff]
    %v57 = vld [vmem:[#allocation5 + $0x88] sm:$0xff]
    %v58 = vld [vmem:[#allocation5 + $0x90] sm:$0xff]
    %v59 = vld [vmem:[#allocation5 + $0x98] sm:$0xff]
    %v60 = vld [vmem:[#allocation5 + $0xa0] sm:$0xff]
    %v61 = vld [vmem:[#allocation5 + $0xa8] sm:$0xff]
    %v62 = vld [vmem:[#allocation5 + $0xb0] sm:$0xff]
    %v63 = vld [vmem:[#allocation5 + $0xb8] sm:$0xff]
    %v64 = vld [vmem:[#allocation5 + $0xc0] sm:$0xff]
    %v65 = vld [vmem:[#allocation5 + $0xc8] sm:$0xff]
    %v66 = vld [vmem:[#allocation5 + $0xd0] sm:$0xff]
    %v67 = vld [vmem:[#allocation5 + $0xd8] sm:$0xff]
    %v68 = vld [vmem:[#allocation5 + $0xe0] sm:$0xff]
    %v69 = vld [vmem:[#allocation5 + $0xe8] sm:$0xff]
    %v70 = vld [vmem:[#allocation5 + $0xf0] sm:$0xff]
    %v71 = vld [vmem:[#allocation5 + $0xf8] sm:$0xff]
    %v72 = vld [vmem:[#allocation5 + $0x100] sm:$0xff]
    %v73 = vld [vmem:[#allocation5 + $0x108] sm:$0xff]
    %v74 = vld [vmem:[#allocation5 + $0x110] sm:$0xff]
    %v75 = vld [vmem:[#allocation5 + $0x118] sm:$0xff]
    %v76 = vld [vmem:[#allocation5 + $0x120] sm:$0xff]
    %v77 = vld [vmem:[#allocation5 + $0x128] sm:$0xff]
    %v78 = vld [vmem:[#allocation5 + $0x130] sm:$0xff]
    %v79 = vld [vmem:[#allocation5 + $0x138] sm:$0xff]
    %v80 = vld [vmem:[#allocation5 + $0x140] sm:$0xff]
    %v81 = vld [vmem:[#allocation5 + $0x148] sm:$0xff]
    %v82 = vld [vmem:[#allocation5 + $0x150] sm:$0xff]
    %v83 = vld [vmem:[#allocation5 + $0x158] sm:$0xff]
    %v84 = vld [vmem:[#allocation5 + $0x160] sm:$0xff]
    %v85 = vld [vmem:[#allocation5 + $0x168] sm:$0xff]
    %v86 = vld [vmem:[#allocation5 + $0x170] sm:$0xff]
    %v87 = vld [vmem:[#allocation5 + $0x178] sm:$0xff]
    %v88 = vld [vmem:[#allocation5 + $0x180] sm:$0xff]
    %v89 = vld [vmem:[#allocation5 + $0x188] sm:$0xff]
    %v90 = vld [vmem:[#allocation5 + $0x190] sm:$0xff]
    %v91 = vld [vmem:[#allocation5 + $0x198] sm:$0xff]
    %v92 = vld [vmem:[#allocation5 + $0x1a0] sm:$0xff]
    %v93 = vld [vmem:[#allocation5 + $0x1a8] sm:$0xff]
    %v94 = vld [vmem:[#allocation5 + $0x1b0] sm:$0xff]
    %v95 = vld [vmem:[#allocation5 + $0x1b8] sm:$0xff]
    %v96 = vld [vmem:[#allocation5 + $0x1c0] sm:$0xff]
    %v97 = vld [vmem:[#allocation5 + $0x1c8] sm:$0xff]
    %v98 = vld [vmem:[#allocation5 + $0x1d0] sm:$0xff]
    %v99 = vld [vmem:[#allocation5 + $0x1d8] sm:$0xff]
    %v100 = vld [vmem:[#allocation5 + $0x1e0] sm:$0xff]
    %v101 = vld [vmem:[#allocation5 + $0x1e8] sm:$0xff]
    %v102 = vld [vmem:[#allocation5 + $0x1f0] sm:$0xff]
    %v103 = vld [vmem:[#allocation5 + $0x1f8] sm:$0xff]
    %v104 = vld [vmem:[#allocation5 + $0x200] sm:$0xff]
    %v105 = vld [vmem:[#allocation5 + $0x208] sm:$0xff]
    %v106 = vld [vmem:[#allocation5 + $0x210] sm:$0xff]
    %v107 = vld [vmem:[#allocation5 + $0x218] sm:$0xff]
    %v108 = vld [vmem:[#allocation5 + $0x220] sm:$0xff]
    %v109 = vld [vmem:[#allocation5 + $0x228] sm:$0xff]
    %v110 = vld [vmem:[#allocation5 + $0x230] sm:$0xff]
    %v111 = vld [vmem:[#allocation5 + $0x238] sm:$0xff]
    %v112 = vld [vmem:[#allocation5 + $0x240] sm:$0xff]
    %v113 = vld [vmem:[#allocation5 + $0x248] sm:$0xff]
    %v114 = vld [vmem:[#allocation5 + $0x250] sm:$0xff]
    %v115 = vld [vmem:[#allocation5 + $0x258] sm:$0xff]
    %v116 = vld [vmem:[#allocation5 + $0x260] sm:$0xff]
    %v117 = vld [vmem:[#allocation5 + $0x268] sm:$0xff]
    %v118 = vld [vmem:[#allocation5 + $0x270] sm:$0xff]
    %v119 = vld [vmem:[#allocation5 + $0x278] sm:$0xff]
    %v120 = vld [vmem:[#allocation5 + $0x280] sm:$0xff]
    %v121 = vld [vmem:[#allocation5 + $0x288] sm:$0xff]
    %v122 = vld [vmem:[#allocation5 + $0x290] sm:$0xff]
    %v123 = vld [vmem:[#allocation5 + $0x298] sm:$0xff]
    %v124 = vld [vmem:[#allocation5 + $0x2a0] sm:$0xff]
    %v125 = vld [vmem:[#allocation5 + $0x2a8] sm:$0xff]
    %v126 = vld [vmem:[#allocation5 + $0x2b0] sm:$0xff]
    %v127 = vld [vmem:[#allocation5 + $0x2b8] sm:$0xff]
    %v128 = vld [vmem:[#allocation5 + $0x2c0] sm:$0xff]
    %v129 = vld [vmem:[#allocation5 + $0x2c8] sm:$0xff]
    %v130 = vld [vmem:[#allocation5 + $0x2d0] sm:$0xff]
    %v131 = vld [vmem:[#allocation5 + $0x2d8] sm:$0xff]
    %v132 = vld [vmem:[#allocation5 + $0x2e0] sm:$0xff]
    %v133 = vld [vmem:[#allocation5 + $0x2e8] sm:$0xff]
    %v134 = vld [vmem:[#allocation5 + $0x2f0] sm:$0xff]
    %v135 = vld [vmem:[#allocation5 + $0x2f8] sm:$0xff]
    %v136 = vld [vmem:[#allocation5 + $0x300] sm:$0xff]
    %v137 = vld [vmem:[#allocation5 + $0x308] sm:$0xff]
    %v138 = vld [vmem:[#allocation5 + $0x310] sm:$0xff]
    %v139 = vld [vmem:[#allocation5 + $0x318] sm:$0xff]
    %v140 = vld [vmem:[#allocation5 + $0x320] sm:$0xff]
    %v141 = vld [vmem:[#allocation5 + $0x328] sm:$0xff]
    %v142 = vld [vmem:[#allocation5 + $0x330] sm:$0xff]
    %v143 = vld [vmem:[#allocation5 + $0x338] sm:$0xff]
    %v144 = vld [vmem:[#allocation5 + $0x340] sm:$0xff]
    %v145 = vld [vmem:[#allocation5 + $0x348] sm:$0xff]
    %v146 = vld [vmem:[#allocation5 + $0x350] sm:$0xff]
    %v147 = vld [vmem:[#allocation5 + $0x358] sm:$0xff]
    %v148 = vld [vmem:[#allocation5 + $0x360] sm:$0xff]
    %v149 = vld [vmem:[#allocation5 + $0x368] sm:$0xff]
    %v150 = vld [vmem:[#allocation5 + $0x370] sm:$0xff]
    %v151 = vld [vmem:[#allocation5 + $0x378] sm:$0xff]
    %v152 = vld [vmem:[#allocation5 + $0x380] sm:$0xff]
    %v153 = vld [vmem:[#allocation5 + $0x388] sm:$0xff]
    %v154 = vld [vmem:[#allocation5 + $0x390] sm:$0xff]
    %v155 = vld [vmem:[#allocation5 + $0x398] sm:$0xff]
    %v156 = vld [vmem:[#allocation5 + $0x3a0] sm:$0xff]
    %v157 = vld [vmem:[#allocation5 + $0x3a8] sm:$0xff]
    %v158 = vld [vmem:[#allocation5 + $0x3b0] sm:$0xff]
    %v159 = vld [vmem:[#allocation5 + $0x3b8] sm:$0xff]
    %v160 = vld [vmem:[#allocation5 + $0x3c0] sm:$0xff]
    %v161 = vld [vmem:[#allocation5 + $0x3c8] sm:$0xff]
    %v162 = vld [vmem:[#allocation5 + $0x3d0] sm:$0xff]
    %v163 = vld [vmem:[#allocation5 + $0x3d8] sm:$0xff]
    %v164 = vld [vmem:[#allocation5 + $0x3e0] sm:$0xff]
    %v165 = vld [vmem:[#allocation5 + $0x3e8] sm:$0xff]
    %v166 = vld [vmem:[#allocation5 + $0x3f0] sm:$0xff]
    %v167 = vld [vmem:[#allocation5 + $0x3f8] sm:$0xff]
    %v168 = vld [vmem:[#allocation5 + $0x400] sm:$0xff]
    %v169 = vld [vmem:[#allocation5 + $0x408] sm:$0xff]
    %v170 = vld [vmem:[#allocation5 + $0x410] sm:$0xff]
    %v171 = vld [vmem:[#allocation5 + $0x418] sm:$0xff]
    %v172 = vld [vmem:[#allocation5 + $0x420] sm:$0xff]
    %v173 = vld [vmem:[#allocation5 + $0x428] sm:$0xff]
    %v174 = vld [vmem:[#allocation5 + $0x430] sm:$0xff]
    %v175 = vld [vmem:[#allocation5 + $0x438] sm:$0xff]
    %v176 = vld [vmem:[#allocation5 + $0x440] sm:$0xff]
    %v177 = vld [vmem:[#allocation5 + $0x448] sm:$0xff]
    %v178 = vld [vmem:[#allocation5 + $0x450] sm:$0xff]
    %v179 = vld [vmem:[#allocation5 + $0x458] sm:$0xff]
    %v180 = vld [vmem:[#allocation5 + $0x460] sm:$0xff]
    %v181 = vld [vmem:[#allocation5 + $0x468] sm:$0xff]
    %v182 = vld [vmem:[#allocation5 + $0x470] sm:$0xff]
    %v183 = vld [vmem:[#allocation5 + $0x478] sm:$0xff]
    %v184 = vld [vmem:[#allocation5 + $0x480] sm:$0xff]
    %v185 = vld [vmem:[#allocation5 + $0x488] sm:$0xff]
    %v186 = vld [vmem:[#allocation5 + $0x490] sm:$0xff]
    %v187 = vld [vmem:[#allocation5 + $0x498] sm:$0xff]
    %v188 = vld [vmem:[#allocation5 + $0x4a0] sm:$0xff]
    %v189 = vld [vmem:[#allocation5 + $0x4a8] sm:$0xff]
    %v190 = vld [vmem:[#allocation5 + $0x4b0] sm:$0xff]
    %v191 = vld [vmem:[#allocation5 + $0x4b8] sm:$0xff]
    %v192 = vld [vmem:[#allocation5 + $0x4c0] sm:$0xff]
    %v193 = vld [vmem:[#allocation5 + $0x4c8] sm:$0xff]
    %v194 = vld [vmem:[#allocation5 + $0x4d0] sm:$0xff]
    %v195 = vld [vmem:[#allocation5 + $0x4d8] sm:$0xff]
    %v196 = vld [vmem:[#allocation5 + $0x4e0] sm:$0xff]
    %v197 = vld [vmem:[#allocation5 + $0x4e8] sm:$0xff]
    %v198 = vld [vmem:[#allocation5 + $0x4f0] sm:$0xff]
    %v199 = vld [vmem:[#allocation5 + $0x4f8] sm:$0xff]
    %v200 = vld [vmem:[#allocation5 + $0x500] sm:$0xff]
    %v201 = vld [vmem:[#allocation5 + $0x508] sm:$0xff]
    %v202 = vld [vmem:[#allocation5 + $0x510] sm:$0xff]
    %v203 = vld [vmem:[#allocation5 + $0x518] sm:$0xff]
    %v204 = vld [vmem:[#allocation5 + $0x520] sm:$0xff]
    %v205 = vld [vmem:[#allocation5 + $0x528] sm:$0xff]
    %v206 = vld [vmem:[#allocation5 + $0x530] sm:$0xff]
    %v207 = vld [vmem:[#allocation5 + $0x538] sm:$0xff]
    %v208 = vld [vmem:[#allocation5 + $0x540] sm:$0xff]
    %v209 = vld [vmem:[#allocation5 + $0x548] sm:$0xff]
    %v210 = vld [vmem:[#allocation5 + $0x550] sm:$0xff]
    %v211 = vld [vmem:[#allocation5 + $0x558] sm:$0xff]
    %v212 = vld [vmem:[#allocation5 + $0x560] sm:$0xff]
    %v213 = vld [vmem:[#allocation5 + $0x568] sm:$0xff]
    %v214 = vld [vmem:[#allocation5 + $0x570] sm:$0xff]
    %v215 = vld [vmem:[#allocation5 + $0x578] sm:$0xff]
    %v216 = vld [vmem:[#allocation5 + $0x580] sm:$0xff]
    %v217 = vld [vmem:[#allocation5 + $0x588] sm:$0xff]
    %v218 = vld [vmem:[#allocation5 + $0x590] sm:$0xff]
    %v219 = vld [vmem:[#allocation5 + $0x598] sm:$0xff]
    %v220 = vld [vmem:[#allocation5 + $0x5a0] sm:$0xff]
    %v221 = vld [vmem:[#allocation5 + $0x5a8] sm:$0xff]
    %v222 = vld [vmem:[#allocation5 + $0x5b0] sm:$0xff]
    %v223 = vld [vmem:[#allocation5 + $0x5b8] sm:$0xff]
    %v224 = vld [vmem:[#allocation5 + $0x5c0] sm:$0xff]
    %v225 = vld [vmem:[#allocation5 + $0x5c8] sm:$0xff]
    %v226 = vld [vmem:[#allocation5 + $0x5d0] sm:$0xff]
    %v227 = vld [vmem:[#allocation5 + $0x5d8] sm:$0xff]
    %v228 = vld [vmem:[#allocation5 + $0x5e0] sm:$0xff]
    %v229 = vld [vmem:[#allocation5 + $0x5e8] sm:$0xff]
    %v230 = vld [vmem:[#allocation5 + $0x5f0] sm:$0xff]
    %v231 = vld [vmem:[#allocation5 + $0x5f8] sm:$0xff]
    %v232 = vld [vmem:[#allocation5 + $0x600] sm:$0xff]
    %v233 = vld [vmem:[#allocation5 + $0x608] sm:$0xff]
    %v234 = vld [vmem:[#allocation5 + $0x610] sm:$0xff]
    %v235 = vld [vmem:[#allocation5 + $0x618] sm:$0xff]
    %v236 = vld [vmem:[#allocation5 + $0x620] sm:$0xff]
    %v237 = vld [vmem:[#allocation5 + $0x628] sm:$0xff]
    %v238 = vld [vmem:[#allocation5 + $0x630] sm:$0xff]
    %v239 = vld [vmem:[#allocation5 + $0x638] sm:$0xff]
    %v240 = vld [vmem:[#allocation5 + $0x640] sm:$0xff]
    %v241 = vld [vmem:[#allocation5 + $0x648] sm:$0xff]
    %v242 = vld [vmem:[#allocation5 + $0x650] sm:$0xff]
    %v243 = vld [vmem:[#allocation5 + $0x658] sm:$0xff]
    %v244 = vld [vmem:[#allocation5 + $0x660] sm:$0xff]
    %v245 = vld [vmem:[#allocation5 + $0x668] sm:$0xff]
    %v246 = vld [vmem:[#allocation5 + $0x670] sm:$0xff]
    %v247 = vld [vmem:[#allocation5 + $0x678] sm:$0xff]
    %v248 = vld [vmem:[#allocation5 + $0x680] sm:$0xff]
    %v249 = vld [vmem:[#allocation5 + $0x688] sm:$0xff]
    %v250 = vld [vmem:[#allocation5 + $0x690] sm:$0xff]
    %v251 = vld [vmem:[#allocation5 + $0x698] sm:$0xff]
    %v252 = vld [vmem:[#allocation5 + $0x6a0] sm:$0xff]
    %v253 = vld [vmem:[#allocation5 + $0x6a8] sm:$0xff]
    %v254 = vld [vmem:[#allocation5 + $0x6b0] sm:$0xff]
    %v255 = vld [vmem:[#allocation5 + $0x6b8] sm:$0xff]
    %v256 = vld [vmem:[#allocation5 + $0x6c0] sm:$0xff]
    %v257 = vld [vmem:[#allocation5 + $0x6c8] sm:$0xff]
    %v258 = vld [vmem:[#allocation5 + $0x6d0] sm:$0xff]
    %v259 = vld [vmem:[#allocation5 + $0x6d8] sm:$0xff]
    %v260 = vld [vmem:[#allocation5 + $0x6e0] sm:$0xff]
    %v261 = vld [vmem:[#allocation5 + $0x6e8] sm:$0xff]
    %v262 = vld [vmem:[#allocation5 + $0x6f0] sm:$0xff]
    %v263 = vld [vmem:[#allocation5 + $0x6f8] sm:$0xff]
    %v264 = vld [vmem:[#allocation5 + $0x700] sm:$0xff]
    %v265 = vld [vmem:[#allocation5 + $0x708] sm:$0xff]
    %v266 = vld [vmem:[#allocation5 + $0x710] sm:$0xff]
    %v267 = vld [vmem:[#allocation5 + $0x718] sm:$0xff]
    %v268 = vld [vmem:[#allocation5 + $0x720] sm:$0xff]
    %v269 = vld [vmem:[#allocation5 + $0x728] sm:$0xff]
    %v270 = vld [vmem:[#allocation5 + $0x730] sm:$0xff]
    %v271 = vld [vmem:[#allocation5 + $0x738] sm:$0xff]
    %v272 = vld [vmem:[#allocation5 + $0x740] sm:$0xff]
    %v273 = vld [vmem:[#allocation5 + $0x748] sm:$0xff]
    %v274 = vld [vmem:[#allocation5 + $0x750] sm:$0xff]
    %v275 = vld [vmem:[#allocation5 + $0x758] sm:$0xff]
    %v276 = vld [vmem:[#allocation5 + $0x760] sm:$0xff]
    %v277 = vld [vmem:[#allocation5 + $0x768] sm:$0xff]
    %v278 = vld [vmem:[#allocation5 + $0x770] sm:$0xff]
    %v279 = vld [vmem:[#allocation5 + $0x778] sm:$0xff]
    %v280 = vld [vmem:[#allocation5 + $0x780] sm:$0xff]
    %v281 = vld [vmem:[#allocation5 + $0x788] sm:$0xff]
    %v282 = vld [vmem:[#allocation5 + $0x790] sm:$0xff]
    %v283 = vld [vmem:[#allocation5 + $0x798] sm:$0xff]
    %v284 = vld [vmem:[#allocation5 + $0x7a0] sm:$0xff]
    %v285 = vld [vmem:[#allocation5 + $0x7a8] sm:$0xff]
    %v286 = vld [vmem:[#allocation5 + $0x7b0] sm:$0xff]
    %v287 = vld [vmem:[#allocation5 + $0x7b8] sm:$0xff]
    %v288 = vld [vmem:[#allocation5 + $0x7c0] sm:$0xff]
    %v289 = vld [vmem:[#allocation5 + $0x7c8] sm:$0xff]
    %v290 = vld [vmem:[#allocation5 + $0x7d0] sm:$0xff]
    %v291 = vld [vmem:[#allocation5 + $0x7d8] sm:$0xff]
    %v292 = vld [vmem:[#allocation5 + $0x7e0] sm:$0xff]
    %v293 = vld [vmem:[#allocation5 + $0x7e8] sm:$0xff]
    %v294 = vld [vmem:[#allocation5 + $0x7f0] sm:$0xff]
    %v295 = vld [vmem:[#allocation5 + $0x7f8] sm:$0xff]
    %v296 = vld [vmem:[#allocation5 + $0x800] sm:$0xff]
    %v297 = vld [vmem:[#allocation5 + $0x808] sm:$0xff]
    %v298 = vld [vmem:[#allocation5 + $0x810] sm:$0xff]
    %v299 = vld [vmem:[#allocation5 + $0x818] sm:$0xff]
    %v300 = vld [vmem:[#allocation5 + $0x820] sm:$0xff]
    %v301 = vld [vmem:[#allocation5 + $0x828] sm:$0xff]
    %v302 = vld [vmem:[#allocation5 + $0x830] sm:$0xff]
    %v303 = vld [vmem:[#allocation5 + $0x838] sm:$0xff]
    %v304 = vld [vmem:[#allocation5 + $0x840] sm:$0xff]
    %v305 = vld [vmem:[#allocation5 + $0x848] sm:$0xff]
    %v306 = vld [vmem:[#allocation5 + $0x850] sm:$0xff]
    %v307 = vld [vmem:[#allocation5 + $0x858] sm:$0xff]
    %v308 = vld [vmem:[#allocation5 + $0x860] sm:$0xff]
    %v309 = vld [vmem:[#allocation5 + $0x868] sm:$0xff]
    %v310 = vld [vmem:[#allocation5 + $0x870] sm:$0xff]
    %v311 = vld [vmem:[#allocation5 + $0x878] sm:$0xff]
    %v312 = vld [vmem:[#allocation5 + $0x880] sm:$0xff]
    %v313 = vld [vmem:[#allocation5 + $0x888] sm:$0xff]
    %v314 = vld [vmem:[#allocation5 + $0x890] sm:$0xff]
    %v315 = vld [vmem:[#allocation5 + $0x898] sm:$0xff]
    %v316 = vld [vmem:[#allocation5 + $0x8a0] sm:$0xff]
    %v317 = vld [vmem:[#allocation5 + $0x8a8] sm:$0xff]
    %v318 = vld [vmem:[#allocation5 + $0x8b0] sm:$0xff]
    %v319 = vld [vmem:[#allocation5 + $0x8b8] sm:$0xff]
    %v320 = vld [vmem:[#allocation5 + $0x8c0] sm:$0xff]
    %v321 = vld [vmem:[#allocation5 + $0x8c8] sm:$0xff]
    %v322 = vld [vmem:[#allocation5 + $0x8d0] sm:$0xff]
    %v323 = vld [vmem:[#allocation5 + $0x8d8] sm:$0xff]
    %v324 = vld [vmem:[#allocation5 + $0x8e0] sm:$0xff]
    %v325 = vld [vmem:[#allocation5 + $0x8e8] sm:$0xff]
    %v326 = vld [vmem:[#allocation5 + $0x8f0] sm:$0xff]
    %v327 = vld [vmem:[#allocation5 + $0x8f8] sm:$0xff]
    %v328 = vld [vmem:[#allocation5 + $0x900] sm:$0xff]
    %v329 = vld [vmem:[#allocation5 + $0x908] sm:$0xff]
    %v330 = vld [vmem:[#allocation5 + $0x910] sm:$0xff]
    %v331 = vld [vmem:[#allocation5 + $0x918] sm:$0xff]
    %v332 = vld [vmem:[#allocation5 + $0x920] sm:$0xff]
    %v333 = vld [vmem:[#allocation5 + $0x928] sm:$0xff]
    %v334 = vld [vmem:[#allocation5 + $0x930] sm:$0xff]
    %v335 = vld [vmem:[#allocation5 + $0x938] sm:$0xff]
    %v336 = vld [vmem:[#allocation5 + $0x940] sm:$0xff]
    %v337 = vld [vmem:[#allocation5 + $0x948] sm:$0xff]
    %v338 = vld [vmem:[#allocation5 + $0x950] sm:$0xff]
    %v339 = vld [vmem:[#allocation5 + $0x958] sm:$0xff]
    %v340 = vld [vmem:[#allocation5 + $0x960] sm:$0xff]
    %v341 = vld [vmem:[#allocation5 + $0x968] sm:$0xff]
    %v342 = vld [vmem:[#allocation5 + $0x970] sm:$0xff]
    %v343 = vld [vmem:[#allocation5 + $0x978] sm:$0xff]
    %v344 = vld [vmem:[#allocation5 + $0x980] sm:$0xff]
    %v345 = vld [vmem:[#allocation5 + $0x988] sm:$0xff]
    %v346 = vld [vmem:[#allocation5 + $0x990] sm:$0xff]
    %v347 = vld [vmem:[#allocation5 + $0x998] sm:$0xff]
    %v348 = vld [vmem:[#allocation5 + $0x9a0] sm:$0xff]
    %v349 = vld [vmem:[#allocation5 + $0x9a8] sm:$0xff]
    %v350 = vld [vmem:[#allocation5 + $0x9b0] sm:$0xff]
    %v351 = vld [vmem:[#allocation5 + $0x9b8] sm:$0xff]
    %v352 = vld [vmem:[#allocation5 + $0x9c0] sm:$0xff]
    %v353 = vld [vmem:[#allocation5 + $0x9c8] sm:$0xff]
    %v354 = vld [vmem:[#allocation5 + $0x9d0] sm:$0xff]
    %v355 = vld [vmem:[#allocation5 + $0x9d8] sm:$0xff]
    %v356 = vld [vmem:[#allocation5 + $0x9e0] sm:$0xff]
    %v357 = vld [vmem:[#allocation5 + $0x9e8] sm:$0xff]
    %v358 = vld [vmem:[#allocation5 + $0x9f0] sm:$0xff]
    %v359 = vld [vmem:[#allocation5 + $0x9f8] sm:$0xff]
    %v360 = vld [vmem:[#allocation5 + $0xa00] sm:$0xff]
    %v361 = vld [vmem:[#allocation5 + $0xa08] sm:$0xff]
    %v362 = vld [vmem:[#allocation5 + $0xa10] sm:$0xff]
    %v363 = vld [vmem:[#allocation5 + $0xa18] sm:$0xff]
    %v364 = vld [vmem:[#allocation5 + $0xa20] sm:$0xff]
    %v365 = vld [vmem:[#allocation5 + $0xa28] sm:$0xff]
    %v366 = vld [vmem:[#allocation5 + $0xa30] sm:$0xff]
    %v367 = vld [vmem:[#allocation5 + $0xa38] sm:$0xff]
    %v368 = vld [vmem:[#allocation5 + $0xa40] sm:$0xff]
    %v369 = vld [vmem:[#allocation5 + $0xa48] sm:$0xff]
    %v370 = vld [vmem:[#allocation5 + $0xa50] sm:$0xff]
    %v371 = vld [vmem:[#allocation5 + $0xa58] sm:$0xff]
    %v372 = vld [vmem:[#allocation5 + $0xa60] sm:$0xff]
    %v373 = vld [vmem:[#allocation5 + $0xa68] sm:$0xff]
    %v374 = vld [vmem:[#allocation5 + $0xa70] sm:$0xff]
    %v375 = vld [vmem:[#allocation5 + $0xa78] sm:$0xff]
    %v376 = vld [vmem:[#allocation5 + $0xa80] sm:$0xff]
    %v377 = vld [vmem:[#allocation5 + $0xa88] sm:$0xff]
    %v378 = vld [vmem:[#allocation5 + $0xa90] sm:$0xff]
    %v379 = vld [vmem:[#allocation5 + $0xa98] sm:$0xff]
    %v380 = vld [vmem:[#allocation5 + $0xaa0] sm:$0xff]
    %v381 = vld [vmem:[#allocation5 + $0xaa8] sm:$0xff]
    %v382 = vld [vmem:[#allocation5 + $0xab0] sm:$0xff]
    %v383 = vld [vmem:[#allocation5 + $0xab8] sm:$0xff]
    %v384 = vld [vmem:[#allocation5 + $0xac0] sm:$0xff]
    %v385 = vld [vmem:[#allocation5 + $0xac8] sm:$0xff]
    %v386 = vld [vmem:[#allocation5 + $0xad0] sm:$0xff]
    %v387 = vld [vmem:[#allocation5 + $0xad8] sm:$0xff]
    %v388 = vld [vmem:[#allocation5 + $0xae0] sm:$0xff]
    %v389 = vld [vmem:[#allocation5 + $0xae8] sm:$0xff]
    %v390 = vld [vmem:[#allocation5 + $0xaf0] sm:$0xff]
    %v391 = vld [vmem:[#allocation5 + $0xaf8] sm:$0xff]
    %v392 = vld [vmem:[#allocation5 + $0xb00] sm:$0xff]
    %v393 = vld [vmem:[#allocation5 + $0xb08] sm:$0xff]
    %v394 = vld [vmem:[#allocation5 + $0xb10] sm:$0xff]
    %v395 = vld [vmem:[#allocation5 + $0xb18] sm:$0xff]
    %v396 = vld [vmem:[#allocation5 + $0xb20] sm:$0xff]
    %v397 = vld [vmem:[#allocation5 + $0xb28] sm:$0xff]
    %v398 = vld [vmem:[#allocation5 + $0xb30] sm:$0xff]
    %v399 = vld [vmem:[#allocation5 + $0xb38] sm:$0xff]
    %v400 = vld [vmem:[#allocation5 + $0xb40] sm:$0xff]
    %v401 = vld [vmem:[#allocation5 + $0xb48] sm:$0xff]
    %v402 = vld [vmem:[#allocation5 + $0xb50] sm:$0xff]
    %v403 = vld [vmem:[#allocation5 + $0xb58] sm:$0xff]
    %v404 = vld [vmem:[#allocation5 + $0xb60] sm:$0xff]
    %v405 = vld [vmem:[#allocation5 + $0xb68] sm:$0xff]
    %v406 = vld [vmem:[#allocation5 + $0xb70] sm:$0xff]
    %v407 = vld [vmem:[#allocation5 + $0xb78] sm:$0xff]
    %v408 = vld [vmem:[#allocation5 + $0xb80] sm:$0xff]
    %v409 = vld [vmem:[#allocation5 + $0xb88] sm:$0xff]
    %v410 = vld [vmem:[#allocation5 + $0xb90] sm:$0xff]
    %v411 = vld [vmem:[#allocation5 + $0xb98] sm:$0xff]
    %v412 = vld [vmem:[#allocation5 + $0xba0] sm:$0xff]
    %v413 = vld [vmem:[#allocation5 + $0xba8] sm:$0xff]
    %v414 = vld [vmem:[#allocation5 + $0xbb0] sm:$0xff]
    %v415 = vld [vmem:[#allocation5 + $0xbb8] sm:$0xff]
    %v416 = vld [vmem:[#allocation5 + $0xbc0] sm:$0xff]
    %v417 = vld [vmem:[#allocation5 + $0xbc8] sm:$0xff]
    %v418 = vld [vmem:[#allocation5 + $0xbd0] sm:$0xff]
    %v419 = vld [vmem:[#allocation5 + $0xbd8] sm:$0xff]
    %v420 = vld [vmem:[#allocation5 + $0xbe0] sm:$0xff]
    %v421 = vld [vmem:[#allocation5 + $0xbe8] sm:$0xff]
    %v422 = vld [vmem:[#allocation5 + $0xbf0] sm:$0xff]
    %v423 = vld [vmem:[#allocation5 + $0xbf8] sm:$0xff]
    %v424 = vld [vmem:[#allocation5 + $0xc00] sm:$0xff]
    %v425 = vld [vmem:[#allocation5 + $0xc08] sm:$0xff]
    %v426 = vld [vmem:[#allocation5 + $0xc10] sm:$0xff]
    %v427 = vld [vmem:[#allocation5 + $0xc18] sm:$0xff]
    %v428 = vld [vmem:[#allocation5 + $0xc20] sm:$0xff]
    %v429 = vld [vmem:[#allocation5 + $0xc28] sm:$0xff]
    %v430 = vld [vmem:[#allocation5 + $0xc30] sm:$0xff]
    %v431 = vld [vmem:[#allocation5 + $0xc38] sm:$0xff]
    %v432 = vld [vmem:[#allocation5 + $0xc40] sm:$0xff]
    %v433 = vld [vmem:[#allocation5 + $0xc48] sm:$0xff]
    %v434 = vld [vmem:[#allocation5 + $0xc50] sm:$0xff]
    %v435 = vld [vmem:[#allocation5 + $0xc58] sm:$0xff]
    %v436 = vld [vmem:[#allocation5 + $0xc60] sm:$0xff]
    %v437 = vld [vmem:[#allocation5 + $0xc68] sm:$0xff]
    %v438 = vld [vmem:[#allocation5 + $0xc70] sm:$0xff]
    %v439 = vld [vmem:[#allocation5 + $0xc78] sm:$0xff]
    %v440 = vld [vmem:[#allocation5 + $0xc80] sm:$0xff]
    %v441 = vld [vmem:[#allocation5 + $0xc88] sm:$0xff]
    %v442 = vld [vmem:[#allocation5 + $0xc90] sm:$0xff]
    %v443 = vld [vmem:[#allocation5 + $0xc98] sm:$0xff]
    %v444 = vld [vmem:[#allocation5 + $0xca0] sm:$0xff]
    %v445 = vld [vmem:[#allocation5 + $0xca8] sm:$0xff]
    %v446 = vld [vmem:[#allocation5 + $0xcb0] sm:$0xff]
    %v447 = vld [vmem:[#allocation5 + $0xcb8] sm:$0xff]
    %v448 = vld [vmem:[#allocation5 + $0xcc0] sm:$0xff]
    %v449 = vld [vmem:[#allocation5 + $0xcc8] sm:$0xff]
    %v450 = vld [vmem:[#allocation5 + $0xcd0] sm:$0xff]
    %v451 = vld [vmem:[#allocation5 + $0xcd8] sm:$0xff]
    %v452 = vld [vmem:[#allocation5 + $0xce0] sm:$0xff]
    %v453 = vld [vmem:[#allocation5 + $0xce8] sm:$0xff]
    %v454 = vld [vmem:[#allocation5 + $0xcf0] sm:$0xff]
    %v455 = vld [vmem:[#allocation5 + $0xcf8] sm:$0xff]
    %v456 = vld [vmem:[#allocation5 + $0xd00] sm:$0xff]
    %v457 = vld [vmem:[#allocation5 + $0xd08] sm:$0xff]
    %v458 = vld [vmem:[#allocation5 + $0xd10] sm:$0xff]
    %v459 = vld [vmem:[#allocation5 + $0xd18] sm:$0xff]
    %v460 = vld [vmem:[#allocation5 + $0xd20] sm:$0xff]
    %v461 = vld [vmem:[#allocation5 + $0xd28] sm:$0xff]
    %v462 = vld [vmem:[#allocation5 + $0xd30] sm:$0xff]
    %v463 = vld [vmem:[#allocation5 + $0xd38] sm:$0xff]
    %v464 = vld [vmem:[#allocation5 + $0xd40] sm:$0xff]
    %v465 = vld [vmem:[#allocation5 + $0xd48] sm:$0xff]
    %v466 = vld [vmem:[#allocation5 + $0xd50] sm:$0xff]
    %v467 = vld [vmem:[#allocation5 + $0xd58] sm:$0xff]
    %v468 = vld [vmem:[#allocation5 + $0xd60] sm:$0xff]
    %v469 = vld [vmem:[#allocation5 + $0xd68] sm:$0xff]
    %v470 = vld [vmem:[#allocation5 + $0xd70] sm:$0xff]
    %v471 = vld [vmem:[#allocation5 + $0xd78] sm:$0xff]
    %v472 = vld [vmem:[#allocation5 + $0xd80] sm:$0xff]
    %v473 = vld [vmem:[#allocation5 + $0xd88] sm:$0xff]
    %v474 = vld [vmem:[#allocation5 + $0xd90] sm:$0xff]
    %v475 = vld [vmem:[#allocation5 + $0xd98] sm:$0xff]
    %v476 = vld [vmem:[#allocation5 + $0xda0] sm:$0xff]
    %v477 = vld [vmem:[#allocation5 + $0xda8] sm:$0xff]
    %v478 = vld [vmem:[#allocation5 + $0xdb0] sm:$0xff]
    %v479 = vld [vmem:[#allocation5 + $0xdb8] sm:$0xff]
    %v480 = vld [vmem:[#allocation5 + $0xdc0] sm:$0xff]
    %v481 = vld [vmem:[#allocation5 + $0xdc8] sm:$0xff]
    %v482 = vld [vmem:[#allocation5 + $0xdd0] sm:$0xff]
    %v483 = vld [vmem:[#allocation5 + $0xdd8] sm:$0xff]
    %v484 = vld [vmem:[#allocation5 + $0xde0] sm:$0xff]
    %v485 = vld [vmem:[#allocation5 + $0xde8] sm:$0xff]
    %v486 = vld [vmem:[#allocation5 + $0xdf0] sm:$0xff]
    %v487 = vld [vmem:[#allocation5 + $0xdf8] sm:$0xff]
    %v488 = vld [vmem:[#allocation5 + $0xe00] sm:$0xff]
    %v489 = vld [vmem:[#allocation5 + $0xe08] sm:$0xff]
    %v490 = vld [vmem:[#allocation5 + $0xe10] sm:$0xff]
    %v491 = vld [vmem:[#allocation5 + $0xe18] sm:$0xff]
    %v492 = vld [vmem:[#allocation5 + $0xe20] sm:$0xff]
    %v493 = vld [vmem:[#allocation5 + $0xe28] sm:$0xff]
    %v494 = vld [vmem:[#allocation5 + $0xe30] sm:$0xff]
    %v495 = vld [vmem:[#allocation5 + $0xe38] sm:$0xff]
    %v496 = vld [vmem:[#allocation5 + $0xe40] sm:$0xff]
    %v497 = vld [vmem:[#allocation5 + $0xe48] sm:$0xff]
    %v498 = vld [vmem:[#allocation5 + $0xe50] sm:$0xff]
    %v499 = vld [vmem:[#allocation5 + $0xe58] sm:$0xff]
    %v500 = vld [vmem:[#allocation5 + $0xe60] sm:$0xff]
    %v501 = vld [vmem:[#allocation5 + $0xe68] sm:$0xff]
    %v502 = vld [vmem:[#allocation5 + $0xe70] sm:$0xff]
    %v503 = vld [vmem:[#allocation5 + $0xe78] sm:$0xff]
    %v504 = vld [vmem:[#allocation5 + $0xe80] sm:$0xff]
    %v505 = vld [vmem:[#allocation5 + $0xe88] sm:$0xff]
    %v506 = vld [vmem:[#allocation5 + $0xe90] sm:$0xff]
    %v507 = vld [vmem:[#allocation5 + $0xe98] sm:$0xff]
    %v508 = vld [vmem:[#allocation5 + $0xea0] sm:$0xff]
    %v509 = vld [vmem:[#allocation5 + $0xea8] sm:$0xff]
    %v510 = vld [vmem:[#allocation5 + $0xeb0] sm:$0xff]
    %v511 = vld [vmem:[#allocation5 + $0xeb8] sm:$0xff]
    %v512 = vld [vmem:[#allocation5 + $0xec0] sm:$0xff]
    %v513 = vld [vmem:[#allocation5 + $0xec8] sm:$0xff]
    %v514 = vld [vmem:[#allocation5 + $0xed0] sm:$0xff]
    %v515 = vld [vmem:[#allocation5 + $0xed8] sm:$0xff]
    %v516 = vld [vmem:[#allocation5 + $0xee0] sm:$0xff]
    %v517 = vld [vmem:[#allocation5 + $0xee8] sm:$0xff]
    %v518 = vld [vmem:[#allocation5 + $0xef0] sm:$0xff]
    %v519 = vld [vmem:[#allocation5 + $0xef8] sm:$0xff]
    %v520 = vld [vmem:[#allocation5 + $0xf00] sm:$0xff]
    %v521 = vld [vmem:[#allocation5 + $0xf08] sm:$0xff]
    %v522 = vld [vmem:[#allocation5 + $0xf10] sm:$0xff]
    %v523 = vld [vmem:[#allocation5 + $0xf18] sm:$0xff]
    %v524 = vld [vmem:[#allocation5 + $0xf20] sm:$0xff]
    %v525 = vld [vmem:[#allocation5 + $0xf28] sm:$0xff]
    %v526 = vld [vmem:[#allocation5 + $0xf30] sm:$0xff]
    %v527 = vld [vmem:[#allocation5 + $0xf38] sm:$0xff]
    %v528 = vld [vmem:[#allocation5 + $0xf40] sm:$0xff]
    %v529 = vld [vmem:[#allocation5 + $0xf48] sm:$0xff]
    %v530 = vld [vmem:[#allocation5 + $0xf50] sm:$0xff]
    %v531 = vld [vmem:[#allocation5 + $0xf58] sm:$0xff]
    %v532 = vld [vmem:[#allocation5 + $0xf60] sm:$0xff]
    %v533 = vld [vmem:[#allocation5 + $0xf68] sm:$0xff]
    %v534 = vld [vmem:[#allocation5 + $0xf70] sm:$0xff]
    %v535 = vld [vmem:[#allocation5 + $0xf78] sm:$0xff]
    %v536 = vld [vmem:[#allocation5 + $0xf80] sm:$0xff]
    %v537 = vld [vmem:[#allocation5 + $0xf88] sm:$0xff]
    %v538 = vld [vmem:[#allocation5 + $0xf90] sm:$0xff]
    %v539 = vld [vmem:[#allocation5 + $0xf98] sm:$0xff]
    %v540 = vld [vmem:[#allocation5 + $0xfa0] sm:$0xff]
    %v541 = vld [vmem:[#allocation5 + $0xfa8] sm:$0xff]
    %v542 = vld [vmem:[#allocation5 + $0xfb0] sm:$0xff]
    %v543 = vld [vmem:[#allocation5 + $0xfb8] sm:$0xff]
    %v544 = vld [vmem:[#allocation5 + $0xfc0] sm:$0xff]
    %v545 = vld [vmem:[#allocation5 + $0xfc8] sm:$0xff]
    %v546 = vld [vmem:[#allocation5 + $0xfd0] sm:$0xff]
    %v547 = vld [vmem:[#allocation5 + $0xfd8] sm:$0xff]
    %v548 = vld [vmem:[#allocation5 + $0xfe0] sm:$0xff]
    %v549 = vld [vmem:[#allocation5 + $0xfe8] sm:$0xff]
    %v550 = vld [vmem:[#allocation5 + $0xff0] sm:$0xff]
    %v551 = vld [vmem:[#allocation5 + $0xff8] sm:$0xff]
    %v552 = vld [vmem:[#allocation5 + $0x1000] sm:$0xff]
    %v553 = vld [vmem:[#allocation5 + $0x1008] sm:$0xff]
    %v554 = vld [vmem:[#allocation5 + $0x1010] sm:$0xff]
    %v555 = vld [vmem:[#allocation5 + $0x1018] sm:$0xff]
    %v556 = vld [vmem:[#allocation5 + $0x1020] sm:$0xff]
    %v557 = vld [vmem:[#allocation5 + $0x1028] sm:$0xff]
    %v558 = vld [vmem:[#allocation5 + $0x1030] sm:$0xff]
    %v559 = vld [vmem:[#allocation5 + $0x1038] sm:$0xff]
    %v560 = vld [vmem:[#allocation5 + $0x1040] sm:$0xff]
    %v561 = vld [vmem:[#allocation5 + $0x1048] sm:$0xff]
    %v562 = vld [vmem:[#allocation5 + $0x1050] sm:$0xff]
    %v563 = vld [vmem:[#allocation5 + $0x1058] sm:$0xff]
    %v564 = vld [vmem:[#allocation5 + $0x1060] sm:$0xff]
    %v565 = vld [vmem:[#allocation5 + $0x1068] sm:$0xff]
    %v566 = vld [vmem:[#allocation5 + $0x1070] sm:$0xff]
    %v567 = vld [vmem:[#allocation5 + $0x1078] sm:$0xff]
    %v568 = vld [vmem:[#allocation5 + $0x1080] sm:$0xff]
    %v569 = vld [vmem:[#allocation5 + $0x1088] sm:$0xff]
    %v570 = vld [vmem:[#allocation5 + $0x1090] sm:$0xff]
    %v571 = vld [vmem:[#allocation5 + $0x1098] sm:$0xff]
    %v572 = vld [vmem:[#allocation5 + $0x10a0] sm:$0xff]
    %v573 = vld [vmem:[#allocation5 + $0x10a8] sm:$0xff]
    %v574 = vld [vmem:[#allocation5 + $0x10b0] sm:$0xff]
    %v575 = vld [vmem:[#allocation5 + $0x10b8] sm:$0xff]
    %v576 = vld [vmem:[#allocation5 + $0x10c0] sm:$0xff]
    %v577 = vld [vmem:[#allocation5 + $0x10c8] sm:$0xff]
    %v578 = vld [vmem:[#allocation5 + $0x10d0] sm:$0xff]
    %v579 = vld [vmem:[#allocation5 + $0x10d8] sm:$0xff]
    %v580 = vld [vmem:[#allocation5 + $0x10e0] sm:$0xff]
    %v581 = vld [vmem:[#allocation5 + $0x10e8] sm:$0xff]
    %v582 = vld [vmem:[#allocation5 + $0x10f0] sm:$0xff]
    %v583 = vld [vmem:[#allocation5 + $0x10f8] sm:$0xff]
    %v584 = vld [vmem:[#allocation5 + $0x1100] sm:$0xff]
    %v585 = vld [vmem:[#allocation5 + $0x1108] sm:$0xff]
    %v586 = vld [vmem:[#allocation5 + $0x1110] sm:$0xff]
    %v587 = vld [vmem:[#allocation5 + $0x1118] sm:$0xff]
    %v588 = vld [vmem:[#allocation5 + $0x1120] sm:$0xff]
    %v589 = vld [vmem:[#allocation5 + $0x1128] sm:$0xff]
    %v590 = vld [vmem:[#allocation5 + $0x1130] sm:$0xff]
    %v591 = vld [vmem:[#allocation5 + $0x1138] sm:$0xff]
    %v592 = vld [vmem:[#allocation5 + $0x1140] sm:$0xff]
    %v593 = vld [vmem:[#allocation5 + $0x1148] sm:$0xff]
    %v594 = vld [vmem:[#allocation5 + $0x1150] sm:$0xff]
    %v595 = vld [vmem:[#allocation5 + $0x1158] sm:$0xff]
    %v596 = vld [vmem:[#allocation5 + $0x1160] sm:$0xff]
    %v597 = vld [vmem:[#allocation5 + $0x1168] sm:$0xff]
    %v598 = vld [vmem:[#allocation5 + $0x1170] sm:$0xff]
    %v599 = vld [vmem:[#allocation5 + $0x1178] sm:$0xff]
    %v600 = vld [vmem:[#allocation5 + $0x1180] sm:$0xff]
    %v601 = vld [vmem:[#allocation5 + $0x1188] sm:$0xff]
    %v602 = vld [vmem:[#allocation5 + $0x1190] sm:$0xff]
    %v603 = vld [vmem:[#allocation5 + $0x1198] sm:$0xff]
    %v604 = vld [vmem:[#allocation5 + $0x11a0] sm:$0xff]
    %v605 = vld [vmem:[#allocation5 + $0x11a8] sm:$0xff]
    %v606 = vld [vmem:[#allocation5 + $0x11b0] sm:$0xff]
    %v607 = vld [vmem:[#allocation5 + $0x11b8] sm:$0xff]
    %v608 = vld [vmem:[#allocation5 + $0x11c0] sm:$0xff]
    %v609 = vld [vmem:[#allocation5 + $0x11c8] sm:$0xff]
    %v610 = vld [vmem:[#allocation5 + $0x11d0] sm:$0xff]
    %v611 = vld [vmem:[#allocation5 + $0x11d8] sm:$0xff]
    %v612 = vld [vmem:[#allocation5 + $0x11e0] sm:$0xff]
    %v613 = vld [vmem:[#allocation5 + $0x11e8] sm:$0xff]
    %v614 = vld [vmem:[#allocation5 + $0x11f0] sm:$0xff]
    %v615 = vld [vmem:[#allocation5 + $0x11f8] sm:$0xff]
    %v618 = vlaneseq
    %v619 = vshrl.u32 %v618, 7
    %v620 = vsub.s32 0, %v619
    %v621 = vrot.slane %v38, %v620
    %v622 = vlaneseq
    %v623 = vshrl.u32 %v622, 7
    %v624 = vsub.s32 1, %v623
    %v625 = vrot.slane %v38, %v624
    %v626 = vlaneseq
    %v627 = vshrl.u32 %v626, 7
    %v628 = vsub.s32 2, %v627
    %v629 = vrot.slane %v38, %v628
    %v630 = vlaneseq
    %v631 = vshrl.u32 %v630, 7
    %v632 = vsub.s32 3, %v631
    %v633 = vrot.slane %v38, %v632
    %v634 = vlaneseq
    %v635 = vshrl.u32 %v634, 7
    %v636 = vsub.s32 4, %v635
    %v637 = vrot.slane %v38, %v636
    %v638 = vlaneseq
    %v639 = vshrl.u32 %v638, 7
    %v640 = vsub.s32 5, %v639
    %v641 = vrot.slane %v38, %v640
    %v642 = vlaneseq
    %v643 = vshrl.u32 %v642, 7
    %v644 = vsub.s32 6, %v643
    %v645 = vrot.slane %v38, %v644
    %v646 = vlaneseq
    %v647 = vshrl.u32 %v646, 7
    %v648 = vsub.s32 7, %v647
    %v649 = vrot.slane %v38, %v648
    %v650 = vlaneseq
    %v651 = vshrl.u32 %v650, 7
    %v652 = vsub.s32 0, %v651
    %v653 = vrot.slane %v39, %v652
    %v654 = vlaneseq
    %v655 = vshrl.u32 %v654, 7
    %v656 = vsub.s32 1, %v655
    %v657 = vrot.slane %v39, %v656
    %v658 = vlaneseq
    %v659 = vshrl.u32 %v658, 7
    %v660 = vsub.s32 2, %v659
    %v661 = vrot.slane %v39, %v660
    %v662 = vlaneseq
    %v663 = vshrl.u32 %v662, 7
    %v664 = vsub.s32 3, %v663
    %v665 = vrot.slane %v39, %v664
    %678 = vmatprep.subr.mxu0 %v41
    %679 = vmatpush1.msra.mxu0 %v40
    %680 = vmatprep.subr.mxu0 %v44
    %681 = vmatpush1.msra.mxu0 %v43
    %682 = vmatprep.subr.mxu0 %v47
    %683 = vmatpush1.msra.mxu0 %v46
    %684 = vmatprep.subr.mxu0 %v50
    %685 = vmatpush1.msra.mxu0 %v49
    %686 = vmatprep.subr.mxu0 %v53
    %687 = vmatpush1.msra.mxu0 %v52
    %688 = vmatprep.subr.mxu0 %v56
    %689 = vmatpush1.msra.mxu0 %v55
    %690 = vmatprep.subr.mxu0 %v59
    %691 = vmatpush1.msra.mxu0 %v58
    %692 = vmatprep.subr.mxu0 %v62
    %693 = vmatpush1.msra.mxu0 %v61
    %694 = vmatprep.subr.mxu0 %v65
    %695 = vmatpush1.msra.mxu0 %v64
    %696 = vmatprep.subr.mxu0 %v68
    %697 = vmatpush1.msra.mxu0 %v67
    %698 = vmatprep.subr.mxu0 %v71
    %699 = vmatpush1.msra.mxu0 %v70
    %700 = vmatprep.subr.mxu0 %v74
    %701 = vmatpush1.msra.mxu0 %v73
    %702 = vmatprep.subr.mxu0 %v77
    %703 = vmatpush1.msra.mxu0 %v76
    %704 = vmatprep.subr.mxu0 %v80
    %705 = vmatpush1.msra.mxu0 %v79
    %706 = vmatprep.subr.mxu0 %v83
    %707 = vmatpush1.msra.mxu0 %v82
    %708 = vmatprep.subr.mxu0 %v86
    %709 = vmatpush1.msra.mxu0 %v85
    %710 = vmatprep.subr.mxu0 %v89
    %711 = vmatpush1.msra.mxu0 %v88
    %712 = vmatprep.subr.mxu0 %v92
    %713 = vmatpush1.msra.mxu0 %v91
    %714 = vmatprep.subr.mxu0 %v95
    %715 = vmatpush1.msra.mxu0 %v94
    %716 = vmatprep.subr.mxu0 %v98
    %717 = vmatpush1.msra.mxu0 %v97
    %718 = vmatprep.subr.mxu0 %v101
    %719 = vmatpush1.msra.mxu0 %v100
    %720 = vmatprep.subr.mxu0 %v104
    %721 = vmatpush1.msra.mxu0 %v103
    %722 = vmatprep.subr.mxu0 %v107
    %723 = vmatpush1.msra.mxu0 %v106
    %724 = vmatprep.subr.mxu0 %v110
    %725 = vmatpush1.msra.mxu0 %v109
    %726 = vmatprep.subr.mxu0 %v113
    %727 = vmatpush1.msra.mxu0 %v112
    %728 = vmatprep.subr.mxu0 %v116
    %729 = vmatpush1.msra.mxu0 %v115
    %730 = vmatprep.subr.mxu0 %v119
    %731 = vmatpush1.msra.mxu0 %v118
    %732 = vmatprep.subr.mxu0 %v122
    %733 = vmatpush1.msra.mxu0 %v121
    %734 = vmatprep.subr.mxu0 %v125
    %735 = vmatpush1.msra.mxu0 %v124
    %736 = vmatprep.subr.mxu0 %v128
    %737 = vmatpush1.msra.mxu0 %v127
    %738 = vmatprep.subr.mxu0 %v131
    %739 = vmatpush1.msra.mxu0 %v130
    %740 = vmatprep.subr.mxu0 %v134
    %741 = vmatpush1.msra.mxu0 %v133
    %742 = vmatprep.mubr.f32.mxu0 %v625
    %743 = vmatmul.mubr.f32.gmra.mrb[0].mxu0 %v621
    %v744 = vpop.f32.mrb[0].mxu0
    %v745 = vadd.f32 0.0, %v744
    %v746 = vpop.f32.mrb[0].mxu0
    %v747 = vadd.f32 0.0, %v746
    %748 = vdwg.mxu0
    %749 = vmatprep.subr.mxu0 %v137
    %750 = vmatpush1.msra.mxu0 %v136
    %751 = vmatprep.subr.mxu0 %v140
    %752 = vmatpush1.msra.mxu0 %v139
    %753 = vmatprep.subr.mxu0 %v143
    %754 = vmatpush1.msra.mxu0 %v142
    %755 = vmatprep.subr.mxu0 %v146
    %756 = vmatpush1.msra.mxu0 %v145
    %757 = vmatprep.subr.mxu0 %v149
    %758 = vmatpush1.msra.mxu0 %v148
    %759 = vmatprep.subr.mxu0 %v152
    %760 = vmatpush1.msra.mxu0 %v151
    %761 = vmatprep.subr.mxu0 %v155
    %762 = vmatpush1.msra.mxu0 %v154
    %763 = vmatprep.subr.mxu0 %v158
    %764 = vmatpush1.msra.mxu0 %v157
    %765 = vmatprep.subr.mxu0 %v161
    %766 = vmatpush1.msra.mxu0 %v160
    %767 = vmatprep.subr.mxu0 %v164
    %768 = vmatpush1.msra.mxu0 %v163
    %769 = vmatprep.subr.mxu0 %v167
    %770 = vmatpush1.msra.mxu0 %v166
    %771 = vmatprep.subr.mxu0 %v170
    %772 = vmatpush1.msra.mxu0 %v169
    %773 = vmatprep.subr.mxu0 %v173
    %774 = vmatpush1.msra.mxu0 %v172
    %775 = vmatprep.subr.mxu0 %v176
    %776 = vmatpush1.msra.mxu0 %v175
    %777 = vmatprep.subr.mxu0 %v179
    %778 = vmatpush1.msra.mxu0 %v178
    %779 = vmatprep.subr.mxu0 %v182
    %780 = vmatpush1.msra.mxu0 %v181
    %781 = vmatprep.subr.mxu0 %v185
    %782 = vmatpush1.msra.mxu0 %v184
    %783 = vmatprep.subr.mxu0 %v188
    %784 = vmatpush1.msra.mxu0 %v187
    %785 = vmatprep.subr.mxu0 %v191
    %786 = vmatpush1.msra.mxu0 %v190
    %787 = vmatprep.subr.mxu0 %v194
    %788 = vmatpush1.msra.mxu0 %v193
    %789 = vmatprep.subr.mxu0 %v197
    %790 = vmatpush1.msra.mxu0 %v196
    %791 = vmatprep.subr.mxu0 %v200
    %792 = vmatpush1.msra.mxu0 %v199
    %793 = vmatprep.subr.mxu0 %v203
    %794 = vmatpush1.msra.mxu0 %v202
    %795 = vmatprep.subr.mxu0 %v206
    %796 = vmatpush1.msra.mxu0 %v205
    %797 = vmatprep.subr.mxu0 %v209
    %798 = vmatpush1.msra.mxu0 %v208
    %799 = vmatprep.subr.mxu0 %v212
    %800 = vmatpush1.msra.mxu0 %v211
    %801 = vmatprep.subr.mxu0 %v215
    %802 = vmatpush1.msra.mxu0 %v214
    %803 = vmatprep.subr.mxu0 %v218
    %804 = vmatpush1.msra.mxu0 %v217
    %805 = vmatprep.subr.mxu0 %v221
    %806 = vmatpush1.msra.mxu0 %v220
    %807 = vmatprep.subr.mxu0 %v224
    %808 = vmatpush1.msra.mxu0 %v223
    %809 = vmatprep.subr.mxu0 %v227
    %810 = vmatpush1.msra.mxu0 %v226
    %811 = vmatprep.subr.mxu0 %v230
    %812 = vmatpush1.msra.mxu0 %v229
    %813 = vmatprep.mubr.f32.mxu0 %v633
    %814 = vmatmul.mubr.f32.gmra.mrb[0].mxu0 %v629
    %v815 = vpop.f32.mrb[0].mxu0
    %v816 = vadd.f32 %v745, %v815
    %v817 = vpop.f32.mrb[0].mxu0
    %v818 = vadd.f32 %v747, %v817
    %819 = vdwg.mxu0
    %820 = vmatprep.subr.mxu0 %v233
    %821 = vmatpush1.msra.mxu0 %v232
    %822 = vmatprep.subr.mxu0 %v236
    %823 = vmatpush1.msra.mxu0 %v235
    %824 = vmatprep.subr.mxu0 %v239
    %825 = vmatpush1.msra.mxu0 %v238
    %826 = vmatprep.subr.mxu0 %v242
    %827 = vmatpush1.msra.mxu0 %v241
    %828 = vmatprep.subr.mxu0 %v245
    %829 = vmatpush1.msra.mxu0 %v244
    %830 = vmatprep.subr.mxu0 %v248
    %831 = vmatpush1.msra.mxu0 %v247
    %832 = vmatprep.subr.mxu0 %v251
    %833 = vmatpush1.msra.mxu0 %v250
    %834 = vmatprep.subr.mxu0 %v254
    %835 = vmatpush1.msra.mxu0 %v253
    %836 = vmatprep.subr.mxu0 %v257
    %837 = vmatpush1.msra.mxu0 %v256
    %838 = vmatprep.subr.mxu0 %v260
    %839 = vmatpush1.msra.mxu0 %v259
    %840 = vmatprep.subr.mxu0 %v263
    %841 = vmatpush1.msra.mxu0 %v262
    %842 = vmatprep.subr.mxu0 %v266
    %843 = vmatpush1.msra.mxu0 %v265
    %844 = vmatprep.subr.mxu0 %v269
    %845 = vmatpush1.msra.mxu0 %v268
    %846 = vmatprep.subr.mxu0 %v272
    %847 = vmatpush1.msra.mxu0 %v271
    %848 = vmatprep.subr.mxu0 %v275
    %849 = vmatpush1.msra.mxu0 %v274
    %850 = vmatprep.subr.mxu0 %v278
    %851 = vmatpush1.msra.mxu0 %v277
    %852 = vmatprep.subr.mxu0 %v281
    %853 = vmatpush1.msra.mxu0 %v280
    %854 = vmatprep.subr.mxu0 %v284
    %855 = vmatpush1.msra.mxu0 %v283
    %856 = vmatprep.subr.mxu0 %v287
    %857 = vmatpush1.msra.mxu0 %v286
    %858 = vmatprep.subr.mxu0 %v290
    %859 = vmatpush1.msra.mxu0 %v289
    %860 = vmatprep.subr.mxu0 %v293
    %861 = vmatpush1.msra.mxu0 %v292
    %862 = vmatprep.subr.mxu0 %v296
    %863 = vmatpush1.msra.mxu0 %v295
    %864 = vmatprep.subr.mxu0 %v299
    %865 = vmatpush1.msra.mxu0 %v298
    %866 = vmatprep.subr.mxu0 %v302
    %867 = vmatpush1.msra.mxu0 %v301
    %868 = vmatprep.subr.mxu0 %v305
    %869 = vmatpush1.msra.mxu0 %v304
    %870 = vmatprep.subr.mxu0 %v308
    %871 = vmatpush1.msra.mxu0 %v307
    %872 = vmatprep.subr.mxu0 %v311
    %873 = vmatpush1.msra.mxu0 %v310
    %874 = vmatprep.subr.mxu0 %v314
    %875 = vmatpush1.msra.mxu0 %v313
    %876 = vmatprep.subr.mxu0 %v317
    %877 = vmatpush1.msra.mxu0 %v316
    %878 = vmatprep.subr.mxu0 %v320
    %879 = vmatpush1.msra.mxu0 %v319
    %880 = vmatprep.subr.mxu0 %v323
    %881 = vmatpush1.msra.mxu0 %v322
    %882 = vmatprep.subr.mxu0 %v326
    %883 = vmatpush1.msra.mxu0 %v325
    %884 = vmatprep.mubr.f32.mxu0 %v641
    %885 = vmatmul.mubr.f32.gmra.mrb[0].mxu0 %v637
    %v886 = vpop.f32.mrb[0].mxu0
    %v887 = vadd.f32 %v816, %v886
    %v888 = vpop.f32.mrb[0].mxu0
    %v889 = vadd.f32 %v818, %v888
    %890 = vdwg.mxu0
    %891 = vmatprep.subr.mxu0 %v329
    %892 = vmatpush1.msra.mxu0 %v328
    %893 = vmatprep.subr.mxu0 %v332
    %894 = vmatpush1.msra.mxu0 %v331
    %895 = vmatprep.subr.mxu0 %v335
    %896 = vmatpush1.msra.mxu0 %v334
    %897 = vmatprep.subr.mxu0 %v338
    %898 = vmatpush1.msra.mxu0 %v337
    %899 = vmatprep.subr.mxu0 %v341
    %900 = vmatpush1.msra.mxu0 %v340
    %901 = vmatprep.subr.mxu0 %v344
    %902 = vmatpush1.msra.mxu0 %v343
    %903 = vmatprep.subr.mxu0 %v347
    %904 = vmatpush1.msra.mxu0 %v346
    %905 = vmatprep.subr.mxu0 %v350
    %906 = vmatpush1.msra.mxu0 %v349
    %907 = vmatprep.subr.mxu0 %v353
    %908 = vmatpush1.msra.mxu0 %v352
    %909 = vmatprep.subr.mxu0 %v356
    %910 = vmatpush1.msra.mxu0 %v355
    %911 = vmatprep.subr.mxu0 %v359
    %912 = vmatpush1.msra.mxu0 %v358
    %913 = vmatprep.subr.mxu0 %v362
    %914 = vmatpush1.msra.mxu0 %v361
    %915 = vmatprep.subr.mxu0 %v365
    %916 = vmatpush1.msra.mxu0 %v364
    %917 = vmatprep.subr.mxu0 %v368
    %918 = vmatpush1.msra.mxu0 %v367
    %919 = vmatprep.subr.mxu0 %v371
    %920 = vmatpush1.msra.mxu0 %v370
    %921 = vmatprep.subr.mxu0 %v374
    %922 = vmatpush1.msra.mxu0 %v373
    %923 = vmatprep.subr.mxu0 %v377
    %924 = vmatpush1.msra.mxu0 %v376
    %925 = vmatprep.subr.mxu0 %v380
    %926 = vmatpush1.msra.mxu0 %v379
    %927 = vmatprep.subr.mxu0 %v383
    %928 = vmatpush1.msra.mxu0 %v382
    %929 = vmatprep.subr.mxu0 %v386
    %930 = vmatpush1.msra.mxu0 %v385
    %931 = vmatprep.subr.mxu0 %v389
    %932 = vmatpush1.msra.mxu0 %v388
    %933 = vmatprep.subr.mxu0 %v392
    %934 = vmatpush1.msra.mxu0 %v391
    %935 = vmatprep.subr.mxu0 %v395
    %936 = vmatpush1.msra.mxu0 %v394
    %937 = vmatprep.subr.mxu0 %v398
    %938 = vmatpush1.msra.mxu0 %v397
    %939 = vmatprep.subr.mxu0 %v401
    %940 = vmatpush1.msra.mxu0 %v400
    %941 = vmatprep.subr.mxu0 %v404
    %942 = vmatpush1.msra.mxu0 %v403
    %943 = vmatprep.subr.mxu0 %v407
    %944 = vmatpush1.msra.mxu0 %v406
    %945 = vmatprep.subr.mxu0 %v410
    %946 = vmatpush1.msra.mxu0 %v409
    %947 = vmatprep.subr.mxu0 %v413
    %948 = vmatpush1.msra.mxu0 %v412
    %949 = vmatprep.subr.mxu0 %v416
    %950 = vmatpush1.msra.mxu0 %v415
    %951 = vmatprep.subr.mxu0 %v419
    %952 = vmatpush1.msra.mxu0 %v418
    %953 = vmatprep.subr.mxu0 %v422
    %954 = vmatpush1.msra.mxu0 %v421
    %955 = vmatprep.mubr.f32.mxu0 %v649
    %956 = vmatmul.mubr.f32.gmra.mrb[0].mxu0 %v645
    %v957 = vpop.f32.mrb[0].mxu0
    %v958 = vadd.f32 %v887, %v957
    %v959 = vpop.f32.mrb[0].mxu0
    %v960 = vadd.f32 %v889, %v959
    %961 = vdwg.mxu0
    %962 = vmatprep.subr.mxu0 %v425
    %963 = vmatpush1.msra.mxu0 %v424
    %964 = vmatprep.subr.mxu0 %v428
    %965 = vmatpush1.msra.mxu0 %v427
    %966 = vmatprep.subr.mxu0 %v431
    %967 = vmatpush1.msra.mxu0 %v430
    %968 = vmatprep.subr.mxu0 %v434
    %969 = vmatpush1.msra.mxu0 %v433
    %970 = vmatprep.subr.mxu0 %v437
    %971 = vmatpush1.msra.mxu0 %v436
    %972 = vmatprep.subr.mxu0 %v440
    %973 = vmatpush1.msra.mxu0 %v439
    %974 = vmatprep.subr.mxu0 %v443
    %975 = vmatpush1.msra.mxu0 %v442
    %976 = vmatprep.subr.mxu0 %v446
    %977 = vmatpush1.msra.mxu0 %v445
    %978 = vmatprep.subr.mxu0 %v449
    %979 = vmatpush1.msra.mxu0 %v448
    %980 = vmatprep.subr.mxu0 %v452
    %981 = vmatpush1.msra.mxu0 %v451
    %982 = vmatprep.subr.mxu0 %v455
    %983 = vmatpush1.msra.mxu0 %v454
    %984 = vmatprep.subr.mxu0 %v458
    %985 = vmatpush1.msra.mxu0 %v457
    %986 = vmatprep.subr.mxu0 %v461
    %987 = vmatpush1.msra.mxu0 %v460
    %988 = vmatprep.subr.mxu0 %v464
    %989 = vmatpush1.msra.mxu0 %v463
    %990 = vmatprep.subr.mxu0 %v467
    %991 = vmatpush1.msra.mxu0 %v466
    %992 = vmatprep.subr.mxu0 %v470
    %993 = vmatpush1.msra.mxu0 %v469
    %994 = vmatprep.subr.mxu0 %v473
    %995 = vmatpush1.msra.mxu0 %v472
    %996 = vmatprep.subr.mxu0 %v476
    %997 = vmatpush1.msra.mxu0 %v475
    %998 = vmatprep.subr.mxu0 %v479
    %999 = vmatpush1.msra.mxu0 %v478
    %1000 = vmatprep.subr.mxu0 %v482
    %1001 = vmatpush1.msra.mxu0 %v481
    %1002 = vmatprep.subr.mxu0 %v485
    %1003 = vmatpush1.msra.mxu0 %v484
    %1004 = vmatprep.subr.mxu0 %v488
    %1005 = vmatpush1.msra.mxu0 %v487
    %1006 = vmatprep.subr.mxu0 %v491
    %1007 = vmatpush1.msra.mxu0 %v490
    %1008 = vmatprep.subr.mxu0 %v494
    %1009 = vmatpush1.msra.mxu0 %v493
    %1010 = vmatprep.subr.mxu0 %v497
    %1011 = vmatpush1.msra.mxu0 %v496
    %1012 = vmatprep.subr.mxu0 %v500
    %1013 = vmatpush1.msra.mxu0 %v499
    %1014 = vmatprep.subr.mxu0 %v503
    %1015 = vmatpush1.msra.mxu0 %v502
    %1016 = vmatprep.subr.mxu0 %v506
    %1017 = vmatpush1.msra.mxu0 %v505
    %1018 = vmatprep.subr.mxu0 %v509
    %1019 = vmatpush1.msra.mxu0 %v508
    %1020 = vmatprep.subr.mxu0 %v512
    %1021 = vmatpush1.msra.mxu0 %v511
    %1022 = vmatprep.subr.mxu0 %v515
    %1023 = vmatpush1.msra.mxu0 %v514
    %1024 = vmatprep.subr.mxu0 %v518
    %1025 = vmatpush1.msra.mxu0 %v517
    %1026 = vmatprep.mubr.f32.mxu0 %v657
    %1027 = vmatmul.mubr.f32.gmra.mrb[0].mxu0 %v653
    %v1028 = vpop.f32.mrb[0].mxu0
    %v1029 = vadd.f32 %v958, %v1028
    %v1030 = vpop.f32.mrb[0].mxu0
    %v1031 = vadd.f32 %v960, %v1030
    %1032 = vdwg.mxu0
    %1033 = vmatprep.subr.mxu0 %v521
    %1034 = vmatpush1.msra.mxu0 %v520
    %1035 = vmatprep.subr.mxu0 %v524
    %1036 = vmatpush1.msra.mxu0 %v523
    %1037 = vmatprep.subr.mxu0 %v527
    %1038 = vmatpush1.msra.mxu0 %v526
    %1039 = vmatprep.subr.mxu0 %v530
    %1040 = vmatpush1.msra.mxu0 %v529
    %1041 = vmatprep.subr.mxu0 %v533
    %1042 = vmatpush1.msra.mxu0 %v532
    %1043 = vmatprep.subr.mxu0 %v536
    %1044 = vmatpush1.msra.mxu0 %v535
    %1045 = vmatprep.subr.mxu0 %v539
    %1046 = vmatpush1.msra.mxu0 %v538
    %1047 = vmatprep.subr.mxu0 %v542
    %1048 = vmatpush1.msra.mxu0 %v541
    %1049 = vmatprep.subr.mxu0 %v545
    %1050 = vmatpush1.msra.mxu0 %v544
    %1051 = vmatprep.subr.mxu0 %v548
    %1052 = vmatpush1.msra.mxu0 %v547
    %1053 = vmatprep.subr.mxu0 %v551
    %1054 = vmatpush1.msra.mxu0 %v550
    %1055 = vmatprep.subr.mxu0 %v554
    %1056 = vmatpush1.msra.mxu0 %v553
    %1057 = vmatprep.subr.mxu0 %v557
    %1058 = vmatpush1.msra.mxu0 %v556
    %1059 = vmatprep.subr.mxu0 %v560
    %1060 = vmatpush1.msra.mxu0 %v559
    %1061 = vmatprep.subr.mxu0 %v563
    %1062 = vmatpush1.msra.mxu0 %v562
    %1063 = vmatprep.subr.mxu0 %v566
    %1064 = vmatpush1.msra.mxu0 %v565
    %1065 = vmatprep.subr.mxu0 %v569
    %1066 = vmatpush1.msra.mxu0 %v568
    %1067 = vmatprep.subr.mxu0 %v572
    %1068 = vmatpush1.msra.mxu0 %v571
    %1069 = vmatprep.subr.mxu0 %v575
    %1070 = vmatpush1.msra.mxu0 %v574
    %1071 = vmatprep.subr.mxu0 %v578
    %1072 = vmatpush1.msra.mxu0 %v577
    %1073 = vmatprep.subr.mxu0 %v581
    %1074 = vmatpush1.msra.mxu0 %v580
    %1075 = vmatprep.subr.mxu0 %v584
    %1076 = vmatpush1.msra.mxu0 %v583
    %1077 = vmatprep.subr.mxu0 %v587
    %1078 = vmatpush1.msra.mxu0 %v586
    %1079 = vmatprep.subr.mxu0 %v590
    %1080 = vmatpush1.msra.mxu0 %v589
    %1081 = vmatprep.subr.mxu0 %v593
    %1082 = vmatpush1.msra.mxu0 %v592
    %1083 = vmatprep.subr.mxu0 %v596
    %1084 = vmatpush1.msra.mxu0 %v595
    %1085 = vmatprep.subr.mxu0 %v599
    %1086 = vmatpush1.msra.mxu0 %v598
    %1087 = vmatprep.subr.mxu0 %v602
    %1088 = vmatpush1.msra.mxu0 %v601
    %1089 = vmatprep.subr.mxu0 %v605
    %1090 = vmatpush1.msra.mxu0 %v604
    %1091 = vmatprep.subr.mxu0 %v608
    %1092 = vmatpush1.msra.mxu0 %v607
    %1093 = vmatprep.subr.mxu0 %v611
    %1094 = vmatpush1.msra.mxu0 %v610
    %1095 = vmatprep.subr.mxu0 %v614
    %1096 = vmatpush1.msra.mxu0 %v613
    %1097 = vmatprep.mubr.f32.mxu0 %v665
    %1098 = vmatmul.mubr.f32.gmra.mrb[0].mxu0 %v661
    %v1099 = vpop.f32.mrb[0].mxu0
    %v1100 = vadd.f32 %v1029, %v1099
    %v1101 = vpop.f32.mrb[0].mxu0
    %v1102 = vadd.f32 %v1031, %v1101
    %1103 = vdwg.mxu0
    %1104 = vmatprep.subr.mxu0 0.0
    %1105 = vmatpush1.msra.mxu0 %v42
    %1106 = vmatprep.subr.mxu0 0.0
    %1107 = vmatpush1.msra.mxu0 %v45
    %1108 = vmatprep.subr.mxu0 0.0
    %1109 = vmatpush1.msra.mxu0 %v48
    %1110 = vmatprep.subr.mxu0 0.0
    %1111 = vmatpush1.msra.mxu0 %v51
    %1112 = vmatprep.subr.mxu0 0.0
    %1113 = vmatpush1.msra.mxu0 %v54
    %1114 = vmatprep.subr.mxu0 0.0
    %1115 = vmatpush1.msra.mxu0 %v57
    %1116 = vmatprep.subr.mxu0 0.0
    %1117 = vmatpush1.msra.mxu0 %v60
    %1118 = vmatprep.subr.mxu0 0.0
    %1119 = vmatpush1.msra.mxu0 %v63
    %1120 = vmatprep.subr.mxu0 0.0
    %1121 = vmatpush1.msra.mxu0 %v66
    %1122 = vmatprep.subr.mxu0 0.0
    %1123 = vmatpush1.msra.mxu0 %v69
    %1124 = vmatprep.subr.mxu0 0.0
    %1125 = vmatpush1.msra.mxu0 %v72
    %1126 = vmatprep.subr.mxu0 0.0
    %1127 = vmatpush1.msra.mxu0 %v75
    %1128 = vmatprep.subr.mxu0 0.0
    %1129 = vmatpush1.msra.mxu0 %v78
    %1130 = vmatprep.subr.mxu0 0.0
    %1131 = vmatpush1.msra.mxu0 %v81
    %1132 = vmatprep.subr.mxu0 0.0
    %1133 = vmatpush1.msra.mxu0 %v84
    %1134 = vmatprep.subr.mxu0 0.0
    %1135 = vmatpush1.msra.mxu0 %v87
    %1136 = vmatprep.subr.mxu0 0.0
    %1137 = vmatpush1.msra.mxu0 %v90
    %1138 = vmatprep.subr.mxu0 0.0
    %1139 = vmatpush1.msra.mxu0 %v93
    %1140 = vmatprep.subr.mxu0 0.0
    %1141 = vmatpush1.msra.mxu0 %v96
    %1142 = vmatprep.subr.mxu0 0.0
    %1143 = vmatpush1.msra.mxu0 %v99
    %1144 = vmatprep.subr.mxu0 0.0
    %1145 = vmatpush1.msra.mxu0 %v102
    %1146 = vmatprep.subr.mxu0 0.0
    %1147 = vmatpush1.msra.mxu0 %v105
    %1148 = vmatprep.subr.mxu0 0.0
    %1149 = vmatpush1.msra.mxu0 %v108
    %1150 = vmatprep.subr.mxu0 0.0
    %1151 = vmatpush1.msra.mxu0 %v111
    %1152 = vmatprep.subr.mxu0 0.0
    %1153 = vmatpush1.msra.mxu0 %v114
    %1154 = vmatprep.subr.mxu0 0.0
    %1155 = vmatpush1.msra.mxu0 %v117
    %1156 = vmatprep.subr.mxu0 0.0
    %1157 = vmatpush1.msra.mxu0 %v120
    %1158 = vmatprep.subr.mxu0 0.0
    %1159 = vmatpush1.msra.mxu0 %v123
    %1160 = vmatprep.subr.mxu0 0.0
    %1161 = vmatpush1.msra.mxu0 %v126
    %1162 = vmatprep.subr.mxu0 0.0
    %1163 = vmatpush1.msra.mxu0 %v129
    %1164 = vmatprep.subr.mxu0 0.0
    %1165 = vmatpush1.msra.mxu0 %v132
    %1166 = vmatprep.subr.mxu0 0.0
    %1167 = vmatpush1.msra.mxu0 %v135
    %1168 = vmatprep.mubr.f32.mxu0 %v625
    %1169 = vmatmul.mubr.f32.gmra.mrb[0].mxu0 %v621
    %v1170 = vpop.f32.mrb[0].mxu0
    %v1171 = vadd.f32 0.0, %v1170
    %v1172 = vpop.f32.mrb[0].mxu0
    %1173 = vdwg.mxu0
    %1174 = vmatprep.subr.mxu0 0.0
    %1175 = vmatpush1.msra.mxu0 %v138
    %1176 = vmatprep.subr.mxu0 0.0
    %1177 = vmatpush1.msra.mxu0 %v141
    %1178 = vmatprep.subr.mxu0 0.0
    %1179 = vmatpush1.msra.mxu0 %v144
    %1180 = vmatprep.subr.mxu0 0.0
    %1181 = vmatpush1.msra.mxu0 %v147
    %1182 = vmatprep.subr.mxu0 0.0
    %1183 = vmatpush1.msra.mxu0 %v150
    %1184 = vmatprep.subr.mxu0 0.0
    %1185 = vmatpush1.msra.mxu0 %v153
    %1186 = vmatprep.subr.mxu0 0.0
    %1187 = vmatpush1.msra.mxu0 %v156
    %1188 = vmatprep.subr.mxu0 0.0
    %1189 = vmatpush1.msra.mxu0 %v159
    %1190 = vmatprep.subr.mxu0 0.0
    %1191 = vmatpush1.msra.mxu0 %v162
    %1192 = vmatprep.subr.mxu0 0.0
    %1193 = vmatpush1.msra.mxu0 %v165
    %1194 = vmatprep.subr.mxu0 0.0
    %1195 = vmatpush1.msra.mxu0 %v168
    %1196 = vmatprep.subr.mxu0 0.0
    %1197 = vmatpush1.msra.mxu0 %v171
    %1198 = vmatprep.subr.mxu0 0.0
    %1199 = vmatpush1.msra.mxu0 %v174
    %1200 = vmatprep.subr.mxu0 0.0
    %1201 = vmatpush1.msra.mxu0 %v177
    %1202 = vmatprep.subr.mxu0 0.0
    %1203 = vmatpush1.msra.mxu0 %v180
    %1204 = vmatprep.subr.mxu0 0.0
    %1205 = vmatpush1.msra.mxu0 %v183
    %1206 = vmatprep.subr.mxu0 0.0
    %1207 = vmatpush1.msra.mxu0 %v186
    %1208 = vmatprep.subr.mxu0 0.0
    %1209 = vmatpush1.msra.mxu0 %v189
    %1210 = vmatprep.subr.mxu0 0.0
    %1211 = vmatpush1.msra.mxu0 %v192
    %1212 = vmatprep.subr.mxu0 0.0
    %1213 = vmatpush1.msra.mxu0 %v195
    %1214 = vmatprep.subr.mxu0 0.0
    %1215 = vmatpush1.msra.mxu0 %v198
    %1216 = vmatprep.subr.mxu0 0.0
    %1217 = vmatpush1.msra.mxu0 %v201
    %1218 = vmatprep.subr.mxu0 0.0
    %1219 = vmatpush1.msra.mxu0 %v204
    %1220 = vmatprep.subr.mxu0 0.0
    %1221 = vmatpush1.msra.mxu0 %v207
    %1222 = vmatprep.subr.mxu0 0.0
    %1223 = vmatpush1.msra.mxu0 %v210
    %1224 = vmatprep.subr.mxu0 0.0
    %1225 = vmatpush1.msra.mxu0 %v213
    %1226 = vmatprep.subr.mxu0 0.0
    %1227 = vmatpush1.msra.mxu0 %v216
    %1228 = vmatprep.subr.mxu0 0.0
    %1229 = vmatpush1.msra.mxu0 %v219
    %1230 = vmatprep.subr.mxu0 0.0
    %1231 = vmatpush1.msra.mxu0 %v222
    %1232 = vmatprep.subr.mxu0 0.0
    %1233 = vmatpush1.msra.mxu0 %v225
    %1234 = vmatprep.subr.mxu0 0.0
    %1235 = vmatpush1.msra.mxu0 %v228
    %1236 = vmatprep.subr.mxu0 0.0
    %1237 = vmatpush1.msra.mxu0 %v231
    %1238 = vmatprep.mubr.f32.mxu0 %v633
    %1239 = vmatmul.mubr.f32.gmra.mrb[0].mxu0 %v629
    %v1240 = vpop.f32.mrb[0].mxu0
    %v1241 = vadd.f32 %v1171, %v1240
    %v1242 = vpop.f32.mrb[0].mxu0
    %1243 = vdwg.mxu0
    %1244 = vmatprep.subr.mxu0 0.0
    %1245 = vmatpush1.msra.mxu0 %v234
    %1246 = vmatprep.subr.mxu0 0.0
    %1247 = vmatpush1.msra.mxu0 %v237
    %1248 = vmatprep.subr.mxu0 0.0
    %1249 = vmatpush1.msra.mxu0 %v240
    %1250 = vmatprep.subr.mxu0 0.0
    %1251 = vmatpush1.msra.mxu0 %v243
    %1252 = vmatprep.subr.mxu0 0.0
    %1253 = vmatpush1.msra.mxu0 %v246
    %1254 = vmatprep.subr.mxu0 0.0
    %1255 = vmatpush1.msra.mxu0 %v249
    %1256 = vmatprep.subr.mxu0 0.0
    %1257 = vmatpush1.msra.mxu0 %v252
    %1258 = vmatprep.subr.mxu0 0.0
    %1259 = vmatpush1.msra.mxu0 %v255
    %1260 = vmatprep.subr.mxu0 0.0
    %1261 = vmatpush1.msra.mxu0 %v258
    %1262 = vmatprep.subr.mxu0 0.0
    %1263 = vmatpush1.msra.mxu0 %v261
    %1264 = vmatprep.subr.mxu0 0.0
    %1265 = vmatpush1.msra.mxu0 %v264
    %1266 = vmatprep.subr.mxu0 0.0
    %1267 = vmatpush1.msra.mxu0 %v267
    %1268 = vmatprep.subr.mxu0 0.0
    %1269 = vmatpush1.msra.mxu0 %v270
    %1270 = vmatprep.subr.mxu0 0.0
    %1271 = vmatpush1.msra.mxu0 %v273
    %1272 = vmatprep.subr.mxu0 0.0
    %1273 = vmatpush1.msra.mxu0 %v276
    %1274 = vmatprep.subr.mxu0 0.0
    %1275 = vmatpush1.msra.mxu0 %v279
    %1276 = vmatprep.subr.mxu0 0.0
    %1277 = vmatpush1.msra.mxu0 %v282
    %1278 = vmatprep.subr.mxu0 0.0
    %1279 = vmatpush1.msra.mxu0 %v285
    %1280 = vmatprep.subr.mxu0 0.0
    %1281 = vmatpush1.msra.mxu0 %v288
    %1282 = vmatprep.subr.mxu0 0.0
    %1283 = vmatpush1.msra.mxu0 %v291
    %1284 = vmatprep.subr.mxu0 0.0
    %1285 = vmatpush1.msra.mxu0 %v294
    %1286 = vmatprep.subr.mxu0 0.0
    %1287 = vmatpush1.msra.mxu0 %v297
    %1288 = vmatprep.subr.mxu0 0.0
    %1289 = vmatpush1.msra.mxu0 %v300
    %1290 = vmatprep.subr.mxu0 0.0
    %1291 = vmatpush1.msra.mxu0 %v303
    %1292 = vmatprep.subr.mxu0 0.0
    %1293 = vmatpush1.msra.mxu0 %v306
    %1294 = vmatprep.subr.mxu0 0.0
    %1295 = vmatpush1.msra.mxu0 %v309
    %1296 = vmatprep.subr.mxu0 0.0
    %1297 = vmatpush1.msra.mxu0 %v312
    %1298 = vmatprep.subr.mxu0 0.0
    %1299 = vmatpush1.msra.mxu0 %v315
    %1300 = vmatprep.subr.mxu0 0.0
    %1301 = vmatpush1.msra.mxu0 %v318
    %1302 = vmatprep.subr.mxu0 0.0
    %1303 = vmatpush1.msra.mxu0 %v321
    %1304 = vmatprep.subr.mxu0 0.0
    %1305 = vmatpush1.msra.mxu0 %v324
    %1306 = vmatprep.subr.mxu0 0.0
    %1307 = vmatpush1.msra.mxu0 %v327
    %1308 = vmatprep.mubr.f32.mxu0 %v641
    %1309 = vmatmul.mubr.f32.gmra.mrb[0].mxu0 %v637
    %v1310 = vpop.f32.mrb[0].mxu0
    %v1311 = vadd.f32 %v1241, %v1310
    %v1312 = vpop.f32.mrb[0].mxu0
    %1313 = vdwg.mxu0
    %1314 = vmatprep.subr.mxu0 0.0
    %1315 = vmatpush1.msra.mxu0 %v330
    %1316 = vmatprep.subr.mxu0 0.0
    %1317 = vmatpush1.msra.mxu0 %v333
    %1318 = vmatprep.subr.mxu0 0.0
    %1319 = vmatpush1.msra.mxu0 %v336
    %1320 = vmatprep.subr.mxu0 0.0
    %1321 = vmatpush1.msra.mxu0 %v339
    %1322 = vmatprep.subr.mxu0 0.0
    %1323 = vmatpush1.msra.mxu0 %v342
    %1324 = vmatprep.subr.mxu0 0.0
    %1325 = vmatpush1.msra.mxu0 %v345
    %1326 = vmatprep.subr.mxu0 0.0
    %1327 = vmatpush1.msra.mxu0 %v348
    %1328 = vmatprep.subr.mxu0 0.0
    %1329 = vmatpush1.msra.mxu0 %v351
    %1330 = vmatprep.subr.mxu0 0.0
    %1331 = vmatpush1.msra.mxu0 %v354
    %1332 = vmatprep.subr.mxu0 0.0
    %1333 = vmatpush1.msra.mxu0 %v357
    %1334 = vmatprep.subr.mxu0 0.0
    %1335 = vmatpush1.msra.mxu0 %v360
    %1336 = vmatprep.subr.mxu0 0.0
    %1337 = vmatpush1.msra.mxu0 %v363
    %1338 = vmatprep.subr.mxu0 0.0
    %1339 = vmatpush1.msra.mxu0 %v366
    %1340 = vmatprep.subr.mxu0 0.0
    %1341 = vmatpush1.msra.mxu0 %v369
    %1342 = vmatprep.subr.mxu0 0.0
    %1343 = vmatpush1.msra.mxu0 %v372
    %1344 = vmatprep.subr.mxu0 0.0
    %1345 = vmatpush1.msra.mxu0 %v375
    %1346 = vmatprep.subr.mxu0 0.0
    %1347 = vmatpush1.msra.mxu0 %v378
    %1348 = vmatprep.subr.mxu0 0.0
    %1349 = vmatpush1.msra.mxu0 %v381
    %1350 = vmatprep.subr.mxu0 0.0
    %1351 = vmatpush1.msra.mxu0 %v384
    %1352 = vmatprep.subr.mxu0 0.0
    %1353 = vmatpush1.msra.mxu0 %v387
    %1354 = vmatprep.subr.mxu0 0.0
    %1355 = vmatpush1.msra.mxu0 %v390
    %1356 = vmatprep.subr.mxu0 0.0
    %1357 = vmatpush1.msra.mxu0 %v393
    %1358 = vmatprep.subr.mxu0 0.0
    %1359 = vmatpush1.msra.mxu0 %v396
    %1360 = vmatprep.subr.mxu0 0.0
    %1361 = vmatpush1.msra.mxu0 %v399
    %1362 = vmatprep.subr.mxu0 0.0
    %1363 = vmatpush1.msra.mxu0 %v402
    %1364 = vmatprep.subr.mxu0 0.0
    %1365 = vmatpush1.msra.mxu0 %v405
    %1366 = vmatprep.subr.mxu0 0.0
    %1367 = vmatpush1.msra.mxu0 %v408
    %1368 = vmatprep.subr.mxu0 0.0
    %1369 = vmatpush1.msra.mxu0 %v411
    %1370 = vmatprep.subr.mxu0 0.0
    %1371 = vmatpush1.msra.mxu0 %v414
    %1372 = vmatprep.subr.mxu0 0.0
    %1373 = vmatpush1.msra.mxu0 %v417
    %1374 = vmatprep.subr.mxu0 0.0
    %1375 = vmatpush1.msra.mxu0 %v420
    %1376 = vmatprep.subr.mxu0 0.0
    %1377 = vmatpush1.msra.mxu0 %v423
    %1378 = vmatprep.mubr.f32.mxu0 %v649
    %1379 = vmatmul.mubr.f32.gmra.mrb[0].mxu0 %v645
    %v1380 = vpop.f32.mrb[0].mxu0
    %v1381 = vadd.f32 %v1311, %v1380
    %v1382 = vpop.f32.mrb[0].mxu0
    %1383 = vdwg.mxu0
    %1384 = vmatprep.subr.mxu0 0.0
    %1385 = vmatpush1.msra.mxu0 %v426
    %1386 = vmatprep.subr.mxu0 0.0
    %1387 = vmatpush1.msra.mxu0 %v429
    %1388 = vmatprep.subr.mxu0 0.0
    %1389 = vmatpush1.msra.mxu0 %v432
    %1390 = vmatprep.subr.mxu0 0.0
    %1391 = vmatpush1.msra.mxu0 %v435
    %1392 = vmatprep.subr.mxu0 0.0
    %1393 = vmatpush1.msra.mxu0 %v438
    %1394 = vmatprep.subr.mxu0 0.0
    %1395 = vmatpush1.msra.mxu0 %v441
    %1396 = vmatprep.subr.mxu0 0.0
    %1397 = vmatpush1.msra.mxu0 %v444
    %1398 = vmatprep.subr.mxu0 0.0
    %1399 = vmatpush1.msra.mxu0 %v447
    %1400 = vmatprep.subr.mxu0 0.0
    %1401 = vmatpush1.msra.mxu0 %v450
    %1402 = vmatprep.subr.mxu0 0.0
    %1403 = vmatpush1.msra.mxu0 %v453
    %1404 = vmatprep.subr.mxu0 0.0
    %1405 = vmatpush1.msra.mxu0 %v456
    %1406 = vmatprep.subr.mxu0 0.0
    %1407 = vmatpush1.msra.mxu0 %v459
    %1408 = vmatprep.subr.mxu0 0.0
    %1409 = vmatpush1.msra.mxu0 %v462
    %1410 = vmatprep.subr.mxu0 0.0
    %1411 = vmatpush1.msra.mxu0 %v465
    %1412 = vmatprep.subr.mxu0 0.0
    %1413 = vmatpush1.msra.mxu0 %v468
    %1414 = vmatprep.subr.mxu0 0.0
    %1415 = vmatpush1.msra.mxu0 %v471
    %1416 = vmatprep.subr.mxu0 0.0
    %1417 = vmatpush1.msra.mxu0 %v474
    %1418 = vmatprep.subr.mxu0 0.0
    %1419 = vmatpush1.msra.mxu0 %v477
    %1420 = vmatprep.subr.mxu0 0.0
    %1421 = vmatpush1.msra.mxu0 %v480
    %1422 = vmatprep.subr.mxu0 0.0
    %1423 = vmatpush1.msra.mxu0 %v483
    %1424 = vmatprep.subr.mxu0 0.0
    %1425 = vmatpush1.msra.mxu0 %v486
    %1426 = vmatprep.subr.mxu0 0.0
    %1427 = vmatpush1.msra.mxu0 %v489
    %1428 = vmatprep.subr.mxu0 0.0
    %1429 = vmatpush1.msra.mxu0 %v492
    %1430 = vmatprep.subr.mxu0 0.0
    %1431 = vmatpush1.msra.mxu0 %v495
    %1432 = vmatprep.subr.mxu0 0.0
    %1433 = vmatpush1.msra.mxu0 %v498
    %1434 = vmatprep.subr.mxu0 0.0
    %1435 = vmatpush1.msra.mxu0 %v501
    %1436 = vmatprep.subr.mxu0 0.0
    %1437 = vmatpush1.msra.mxu0 %v504
    %1438 = vmatprep.subr.mxu0 0.0
    %1439 = vmatpush1.msra.mxu0 %v507
    %1440 = vmatprep.subr.mxu0 0.0
    %1441 = vmatpush1.msra.mxu0 %v510
    %1442 = vmatprep.subr.mxu0 0.0
    %1443 = vmatpush1.msra.mxu0 %v513
    %1444 = vmatprep.subr.mxu0 0.0
    %1445 = vmatpush1.msra.mxu0 %v516
    %1446 = vmatprep.subr.mxu0 0.0
    %1447 = vmatpush1.msra.mxu0 %v519
    %1448 = vmatprep.mubr.f32.mxu0 %v657
    %1449 = vmatmul.mubr.f32.gmra.mrb[0].mxu0 %v653
    %v1450 = vpop.f32.mrb[0].mxu0
    %v1451 = vadd.f32 %v1381, %v1450
    %v1452 = vpop.f32.mrb[0].mxu0
    %1453 = vdwg.mxu0
    %1454 = vmatprep.subr.mxu0 0.0
    %1455 = vmatpush1.msra.mxu0 %v522
    %1456 = vmatprep.subr.mxu0 0.0
    %1457 = vmatpush1.msra.mxu0 %v525
    %1458 = vmatprep.subr.mxu0 0.0
    %1459 = vmatpush1.msra.mxu0 %v528
    %1460 = vmatprep.subr.mxu0 0.0
    %1461 = vmatpush1.msra.mxu0 %v531
    %1462 = vmatprep.subr.mxu0 0.0
    %1463 = vmatpush1.msra.mxu0 %v534
    %1464 = vmatprep.subr.mxu0 0.0
    %1465 = vmatpush1.msra.mxu0 %v537
    %1466 = vmatprep.subr.mxu0 0.0
    %1467 = vmatpush1.msra.mxu0 %v540
    %1468 = vmatprep.subr.mxu0 0.0
    %1469 = vmatpush1.msra.mxu0 %v543
    %1470 = vmatprep.subr.mxu0 0.0
    %1471 = vmatpush1.msra.mxu0 %v546
    %1472 = vmatprep.subr.mxu0 0.0
    %1473 = vmatpush1.msra.mxu0 %v549
    %1474 = vmatprep.subr.mxu0 0.0
    %1475 = vmatpush1.msra.mxu0 %v552
    %1476 = vmatprep.subr.mxu0 0.0
    %1477 = vmatpush1.msra.mxu0 %v555
    %1478 = vmatprep.subr.mxu0 0.0
    %1479 = vmatpush1.msra.mxu0 %v558
    %1480 = vmatprep.subr.mxu0 0.0
    %1481 = vmatpush1.msra.mxu0 %v561
    %1482 = vmatprep.subr.mxu0 0.0
    %1483 = vmatpush1.msra.mxu0 %v564
    %1484 = vmatprep.subr.mxu0 0.0
    %1485 = vmatpush1.msra.mxu0 %v567
    %1486 = vmatprep.subr.mxu0 0.0
    %1487 = vmatpush1.msra.mxu0 %v570
    %1488 = vmatprep.subr.mxu0 0.0
    %1489 = vmatpush1.msra.mxu0 %v573
    %1490 = vmatprep.subr.mxu0 0.0
    %1491 = vmatpush1.msra.mxu0 %v576
    %1492 = vmatprep.subr.mxu0 0.0
    %1493 = vmatpush1.msra.mxu0 %v579
    %1494 = vmatprep.subr.mxu0 0.0
    %1495 = vmatpush1.msra.mxu0 %v582
    %1496 = vmatprep.subr.mxu0 0.0
    %1497 = vmatpush1.msra.mxu0 %v585
    %1498 = vmatprep.subr.mxu0 0.0
    %1499 = vmatpush1.msra.mxu0 %v588
    %1500 = vmatprep.subr.mxu0 0.0
    %1501 = vmatpush1.msra.mxu0 %v591
    %1502 = vmatprep.subr.mxu0 0.0
    %1503 = vmatpush1.msra.mxu0 %v594
    %1504 = vmatprep.subr.mxu0 0.0
    %1505 = vmatpush1.msra.mxu0 %v597
    %1506 = vmatprep.subr.mxu0 0.0
    %1507 = vmatpush1.msra.mxu0 %v600
    %1508 = vmatprep.subr.mxu0 0.0
    %1509 = vmatpush1.msra.mxu0 %v603
    %1510 = vmatprep.subr.mxu0 0.0
    %1511 = vmatpush1.msra.mxu0 %v606
    %1512 = vmatprep.subr.mxu0 0.0
    %1513 = vmatpush1.msra.mxu0 %v609
    %1514 = vmatprep.subr.mxu0 0.0
    %1515 = vmatpush1.msra.mxu0 %v612
    %1516 = vmatprep.subr.mxu0 0.0
    %1517 = vmatpush1.msra.mxu0 %v615
    %1518 = vmatprep.mubr.f32.mxu0 %v665
    %1519 = vmatmul.mubr.f32.gmra.mrb[0].mxu0 %v661
    %v1520 = vpop.f32.mrb[0].mxu0
    %v1521 = vadd.f32 %v1451, %v1520
    %v1522 = vpop.f32.mrb[0].mxu0
    %1523 = vdwg.mxu0
    %v1527 = vcombine.low %v1100, %v1102
    %v1529 = vunpack.c.l.s4 1966171168
    %v1530 = vunpack.c.0.s8 %v1529
    %v1531 = vlaneseq
    %v1532 = vshrl.u32 %v1531, 7
    %v1533 = vsub.s32 %v1530, %v1532
    %v1534 = vrot.slane %v1527, %v1533
    %v1536 = vunpack.c.l.s4 1966171168
    %v1537 = vunpack.c.0.s8 %v1536
    %v1538 = vlaneseq
    %v1539 = vshrl.u32 %v1538, 7
    %v1540 = vsub.s32 %v1537, %v1539
    %v1541 = vrot.slane %v1521, %v1540
    %v1542 = vcombine.low %v1534, %v1541
    %v1544 = vunpack.c.l.s4 1966171168
    %v1545 = vunpack.c.0.s8 %v1544
    %v1546 = vlaneseq
    %v1547 = vshrl.u32 %v1546, 7
    %v1548 = vsub.s32 %v1545, %v1547
    %v1549 = vrot.slane %v1542, %v1548
    %v1551 = vlaneseq
    %vm1552 = vcmp.ge.s32.totalorder %v1551, 0
    %vm1553 = vcmp.lt.s32.totalorder %v1551, 384
    %vm1554 = vmand %vm1552, %vm1553
    %1555 = vst.msk [vmem:[#allocation7] sm:$0x7] %vm1554, %v1549
    // Predicated region
    $region18: #{tpu_custom_call.1} parent=1 // pred_check
      _
    $region19: #{tpu_custom_call.1} parent=1 // pred_check_branch
      %1557 = sbr.rel (0) target = $region21
    $region20: #{tpu_custom_call.1} parent=1 // pred_region
      %s1559 = ssub.s32 48, 48
      %1560 = vsyncadd [#allocation4], %s1559
      %s1562 = sshll.u32 [#allocation7], 4
      %s1563 = int_to_ptr.vmem [resolvable:$true] %s1562
      %1565 = dma.vmem_to_hbm [thread:$0]  %s1563, 48, %s2, [#allocation4]
    $region21: #{tpu_custom_call.1} parent=1 // pred_fallthru
      _
    // Predicated region
    $region22: #{tpu_custom_call.1} parent=1 // pred_check
      _
    $region23: #{tpu_custom_call.1} parent=1 // pred_check_branch
      %1567 = sbr.rel (0) target = $region25
    $region24: #{tpu_custom_call.1} parent=1 // pred_region
      %1568 = dma.done [#allocation4], 48
    $region25: #{tpu_custom_call.1} parent=1 // pred_fallthru
      _
    %1569 = vsyncpa [#allocation3], 1
    %1570 = vsyncpa [#allocation6], 1
    %1571 = vsyncpa [#allocation4], 1

</llo_original>
